<compile_context>
chip_gen: v7x
topology: tpu7x:2x2x1
jax: 0.10.0
libtpu: 0.0.40
codegen_flags: <defaults>
</compile_context>

<pallas_src>
import functools
import numpy as np
import jax
import jax.numpy as jnp
from jax import lax
from jax.experimental import pallas as pl
from jax.experimental.pallas import tpu as pltpu


# ------------------------------ Pallas kernel --------------------------------

def fused_mha_kernel(q_ref, k_ref, v_ref, m_ref,
                     wq_ref, wk_ref, wv_ref, wo_ref,
                     bq_ref, bk_ref, bv_ref, bo_ref,
                     o_ref, kp_ref, vp_ref, *, num_heads, d_k, d_v):
    # Blocks per grid step (b, i):
    #   q: (1, bq, d_model) bf16          k/v: (1, Lk, d_model) bf16 (resident per batch)
    #   m: (1, bq, Lk) int8 (nonzero = masked position)
    #   wq/wk: (d_model, H*d_k) bf16   wv: (d_model, H*d_v) bf16   wo: (H*d_v, d_model) bf16
    #   bq/bk: (1, H*d_k) f32   bv: (1, H*d_v) f32   bo: (1, d_model) f32
    #   o: (1, bq, d_model) f32
    # Scratch (persists across the q-tiles of a batch):
    #   kp: (Lk, H*d_k) bf16   vp: (Lk, H*d_v) bf16

    # --- K/V projections depend only on the batch: compute once at the first q-tile.
    @pl.when(pl.program_id(1) == 0)
    def _():
        kp = jnp.dot(k_ref[0], wk_ref[...],
                     preferred_element_type=jnp.float32) + bk_ref[...]
        vp = jnp.dot(v_ref[0], wv_ref[...],
                     preferred_element_type=jnp.float32) + bv_ref[...]
        kp_ref[...] = kp.astype(jnp.bfloat16)
        vp_ref[...] = vp.astype(jnp.bfloat16)

    # --- Fused all-head Q projection (1/sqrt(d_k) pre-folded into wq/bq at prep time).
    q_all = (jnp.dot(q_ref[0], wq_ref[...],
                     preferred_element_type=jnp.float32)
             + bq_ref[...]).astype(jnp.bfloat16)                     # (bq, H*d_k)

    kp_all = kp_ref[...]                                             # (Lk, H*d_k) bf16
    vp_all = vp_ref[...]                                             # (Lk, H*d_v) bf16
    mask = m_ref[0]                                                  # (bq, Lk) int8

    ctx_heads = []
    for h in range(num_heads):                                       # static unrolled loop
        q_h = q_all[:, h * d_k:(h + 1) * d_k]                        # (bq, d_k) bf16
        k_h = kp_all[:, h * d_k:(h + 1) * d_k]                       # (Lk, d_k) bf16
        v_h = vp_all[:, h * d_v:(h + 1) * d_v]                       # (Lk, d_v) bf16

        # scores = (scaled Q) K^T; contract last dims directly (no K transpose copy).
        scores = lax.dot_general(
            q_h, k_h, dimension_numbers=(((1,), (1,)), ((), ())),
            preferred_element_type=jnp.float32)                      # (bq, Lk) f32
        # Exact masked_fill(-10000.0) semantics (matches torch.masked_fill_).
        scores = jnp.where(mask != 0, jnp.float32(-10000.0), scores)

        # Numerically stable softmax, kept in f32 on the VPU/EUP.
        s_max = jnp.max(scores, axis=-1, keepdims=True)
        p = jnp.exp(scores - s_max)
        p = p * pl.reciprocal(jnp.sum(p, axis=-1, keepdims=True), approx=True)

        ctx_heads.append(jnp.dot(p.astype(jnp.bfloat16), v_h,
                                 preferred_element_type=jnp.float32))  # (bq, d_v) f32

    # --- Single lane-dense output projection over all heads.
    ctx_all = jnp.concatenate(ctx_heads, axis=-1).astype(jnp.bfloat16)  # (bq, H*d_v)
    o_ref[0] = (jnp.dot(ctx_all, wo_ref[...],
                        preferred_element_type=jnp.float32) + bo_ref[...])


# -------------------------------- wrapper -------------------------------------

def prepare_mha_params(params, *, d_k):
    """One-time parameter prep (do NOT redo per forward): bf16 casts, fused slabs,
    and 1/sqrt(d_k) folded into wq/bq so no in-kernel score scaling is needed."""
    scale = 1.0 / np.sqrt(d_k)
    return {
        "wq": (params["wq"] * scale).astype(jnp.bfloat16),        # (d_model, H*d_k)
        "wk": params["wk"].astype(jnp.bfloat16),                  # (d_model, H*d_k)
        "wv": params["wv"].astype(jnp.bfloat16),                  # (d_model, H*d_v)
        "wo": params["wo"].astype(jnp.bfloat16),                  # (H*d_v, d_model)
        "bq": (params["bq"] * scale).reshape(1, -1).astype(jnp.float32),
        "bk": params["bk"].reshape(1, -1).astype(jnp.float32),
        "bv": params["bv"].reshape(1, -1).astype(jnp.float32),
        "bo": params["bo"].reshape(1, -1).astype(jnp.float32),
    }


def multi_head_attention(prepped, Q, K, V, attn_mask, *, d_k, d_v, num_heads,
                         block_q=256):
    """Forward pass matching MultiHeadAttention.forward (dropout p=0.0).

    `prepped` must come from prepare_mha_params. block_q=256 targets the 256-wide
    MXUs on v6e/v7x; sweep 128/256/512 per chip if needed.
    """
    N, q_len, d_model = Q.shape
    k_len = K.shape[1]
    block_q = min(block_q, q_len)
    n_q = pl.cdiv(q_len, block_q)

    # bf16 inputs (halves Q/K/V DMA + VMEM residency); int8 mask (4x less DMA).
    Qb = Q.astype(jnp.bfloat16)
    Kb = K.astype(jnp.bfloat16)
    Vb = V.astype(jnp.bfloat16)
    mask_i8 = attn_mask.astype(jnp.int8)

    kernel = functools.partial(fused_mha_kernel,
                               num_heads=num_heads, d_k=d_k, d_v=d_v)
    wspec = lambda b, i: (0, 0)

    return pl.pallas_call(
        kernel,
        out_shape=jax.ShapeDtypeStruct((N, q_len, d_model), jnp.float32),
        grid=(N, n_q),
        in_specs=[
            pl.BlockSpec((1, block_q, d_model), lambda b, i: (b, i, 0)),   # Q tile (bf16)
            pl.BlockSpec((1, k_len, d_model), lambda b, i: (b, 0, 0)),     # K (resident per batch)
            pl.BlockSpec((1, k_len, d_model), lambda b, i: (b, 0, 0)),     # V (resident per batch)
            pl.BlockSpec((1, block_q, k_len), lambda b, i: (b, i, 0)),     # mask (int8)
            pl.BlockSpec((d_model, num_heads * d_k), wspec),               # wq (resident, scaled)
            pl.BlockSpec((d_model, num_heads * d_k), wspec),               # wk
            pl.BlockSpec((d_model, num_heads * d_v), wspec),               # wv
            pl.BlockSpec((num_heads * d_v, d_model), wspec),               # wo
            pl.BlockSpec((1, num_heads * d_k), wspec),                     # bq (scaled)
            pl.BlockSpec((1, num_heads * d_k), wspec),                     # bk
            pl.BlockSpec((1, num_heads * d_v), wspec),                     # bv
            pl.BlockSpec((1, d_model), wspec),                             # bo
        ],
        out_specs=pl.BlockSpec((1, block_q, d_model), lambda b, i: (b, i, 0)),
        scratch_shapes=[
            pltpu.VMEM((k_len, num_heads * d_k), jnp.bfloat16),   # per-batch K projection
            pltpu.VMEM((k_len, num_heads * d_v), jnp.bfloat16),   # per-batch V projection
        ],
        compiler_params=pltpu.CompilerParams(
            # Batch axis parallel (megacore-shardable); q axis arbitrary so the
            # per-batch K/V-projection scratch init at i==0 runs on every core.
            dimension_semantics=("parallel", "arbitrary"),
            # Explicit VMEM budget (v7x has 64 MiB physical; default scoped is 32 MiB).
            vmem_limit_bytes=64 * 1024 * 1024),
    )(Qb, Kb, Vb, mask_i8,
      prepped["wq"], prepped["wk"], prepped["wv"], prepped["wo"],
      prepped["bq"], prepped["bk"], prepped["bv"], prepped["bo"])


# ------------------------------- reference ------------------------------------

def reference_mha(params, Q, K, V, attn_mask, *, d_k, d_v, num_heads):
    N, q_len, d_model = Q.shape
    k_len = K.shape[1]
    q_p = Q @ params["wq"] + params["bq"]
    k_p = K @ params["wk"] + params["bk"]
    v_p = V @ params["wv"] + params["bv"]
    qh = q_p.reshape(N, q_len, num_heads, d_k).transpose(0, 2, 1, 3)
    kh = k_p.reshape(N, k_len, num_heads, d_k).transpose(0, 2, 1, 3)
    vh = v_p.reshape(N, k_len, num_heads, d_v).transpose(0, 2, 1, 3)
    scores = jnp.einsum("nhqd,nhkd->nhqk", qh, kh) / np.sqrt(d_k)
    mask = (attn_mask[:, None, :, :] > 0)
    scores = jnp.where(mask, -10000.0, scores)
    attns = jax.nn.softmax(scores, axis=-1)
    out_h = jnp.einsum("nhqk,nhkd->nhqd", attns, vh)
    out = out_h.transpose(0, 2, 1, 3).reshape(N, q_len, num_heads * d_v)
    return out @ params["wo"] + params["bo"]


# --------------------------------- main ----------------------------------------

if __name__ == "__main__":
    # Module hyperparameters (small, consistent with the PyTorch module)
    d_model, d_k, d_v, num_heads = 32, 8, 8, 4
    N, q_len, k_len = 2, 8, 8

    key = jax.random.PRNGKey(0)
    keys = jax.random.split(key, 12)

    # Deterministic parameter init matching the PyTorch __init__ std devs.
    # Weights stored as (in_features, out_features) so y = x @ W + b.
    std_qk = np.sqrt(2.0 / (d_model + d_k))
    std_v = np.sqrt(2.0 / (d_model + d_v))
    params = {
        "wq": std_qk * jax.random.normal(keys[0], (d_model, d_k * num_heads), jnp.float32),
        "wk": std_qk * jax.random.normal(keys[1], (d_model, d_k * num_heads), jnp.float32),
        "wv": std_v * jax.random.normal(keys[2], (d_model, d_v * num_heads), jnp.float32),
        "wo": std_v * jax.random.normal(keys[3], (d_v * num_heads, d_model), jnp.float32),
        "bq": 0.01 * jax.random.normal(keys[4], (d_k * num_heads,), jnp.float32),
        "bk": 0.01 * jax.random.normal(keys[5], (d_k * num_heads,), jnp.float32),
        "bv": 0.01 * jax.random.normal(keys[6], (d_v * num_heads,), jnp.float32),
        "bo": 0.01 * jax.random.normal(keys[7], (d_model,), jnp.float32),
    }

    Q = jax.random.normal(keys[8], (N, q_len, d_model), jnp.float32)
    K = jax.random.normal(keys[9], (N, k_len, d_model), jnp.float32)
    V = jax.random.normal(keys[10], (N, k_len, d_model), jnp.float32)
    # Boolean-style mask (N, q_len, k_len): ~30% of positions masked out.
    attn_mask = (jax.random.uniform(keys[11], (N, q_len, k_len)) < 0.3).astype(jnp.int32)

    # One-time parameter prep (bf16 slabs, scale folded into wq/bq).
    prepped = prepare_mha_params(params, d_k=d_k)

    out = multi_head_attention(
        prepped, Q, K, V, attn_mask, d_k=d_k, d_v=d_v, num_heads=num_heads
    )
    out = jax.block_until_ready(out)

    ref = reference_mha(
        params, Q, K, V, attn_mask, d_k=d_k, d_v=d_v, num_heads=num_heads
    )
    np.testing.assert_allclose(np.asarray(out), np.asarray(ref), rtol=2e-2, atol=2e-2)

    print("KERNEL_OK")
</pallas_src>

<mosaic_0001>
module attributes {stable_mosaic.version = 11 : i64} {
  func.func @fused_mha_kernel(%arg0: i32, %arg1: i32, %arg2: memref<1x8x32xbf16, #tpu.memory_space<vmem>>, %arg3: memref<1x8x32xbf16, #tpu.memory_space<vmem>>, %arg4: memref<1x8x32xbf16, #tpu.memory_space<vmem>>, %arg5: memref<1x8x8xi8, #tpu.memory_space<vmem>>, %arg6: memref<32x32xbf16, #tpu.memory_space<vmem>>, %arg7: memref<32x32xbf16, #tpu.memory_space<vmem>>, %arg8: memref<32x32xbf16, #tpu.memory_space<vmem>>, %arg9: memref<32x32xbf16, #tpu.memory_space<vmem>>, %arg10: memref<1x32xf32, #tpu.memory_space<vmem>>, %arg11: memref<1x32xf32, #tpu.memory_space<vmem>>, %arg12: memref<1x32xf32, #tpu.memory_space<vmem>>, %arg13: memref<1x32xf32, #tpu.memory_space<vmem>>, %arg14: memref<1x8x32xf32, #tpu.memory_space<vmem>>, %arg15: memref<8x32xbf16, #tpu.memory_space<vmem>>, %arg16: memref<8x32xbf16, #tpu.memory_space<vmem>>) attributes {dimension_semantics = [#tpu.dimension_semantics<parallel>, #tpu.dimension_semantics<arbitrary>], iteration_bounds = array<i64: 2, 1>, scalar_prefetch = 0 : i64, scratch_operands = 2 : i64, tpu.core_type = #tpu.core_type<tc>, window_params = [{transform_indices = @transform_0, window_bounds = array<i64: 1, 8, 32>}, {transform_indices = @transform_1, window_bounds = array<i64: 1, 8, 32>}, {transform_indices = @transform_2, window_bounds = array<i64: 1, 8, 32>}, {transform_indices = @transform_3, window_bounds = array<i64: 1, 8, 8>}, {pipeline_mode = #tpu.pipeline_mode<synchronous>, transform_indices = @transform_4, window_bounds = array<i64: 32, 32>}, {pipeline_mode = #tpu.pipeline_mode<synchronous>, transform_indices = @transform_5, window_bounds = array<i64: 32, 32>}, {pipeline_mode = #tpu.pipeline_mode<synchronous>, transform_indices = @transform_6, window_bounds = array<i64: 32, 32>}, {pipeline_mode = #tpu.pipeline_mode<synchronous>, transform_indices = @transform_7, window_bounds = array<i64: 32, 32>}, {pipeline_mode = #tpu.pipeline_mode<synchronous>, transform_indices = @transform_8, window_bounds = array<i64: 1, 32>}, {pipeline_mode = #tpu.pipeline_mode<synchronous>, transform_indices = @transform_9, window_bounds = array<i64: 1, 32>}, {pipeline_mode = #tpu.pipeline_mode<synchronous>, transform_indices = @transform_10, window_bounds = array<i64: 1, 32>}, {pipeline_mode = #tpu.pipeline_mode<synchronous>, transform_indices = @transform_11, window_bounds = array<i64: 1, 32>}, {transform_indices = @transform_12, window_bounds = array<i64: 1, 8, 32>}]} {
    %c0_i32 = arith.constant 0 : i32
    %0 = arith.cmpi eq, %arg1, %c0_i32 : i32
    %1 = arith.extui %0 : i1 to i32
    %c0_i32_0 = arith.constant 0 : i32
    %2 = arith.cmpi ne, %1, %c0_i32_0 : i32
    scf.if %2 {
      %c0_45 = arith.constant 0 : index
      %c0_46 = arith.constant 0 : index
      %c0_47 = arith.constant 0 : index
      %105 = vector.load %arg3[%c0_45, %c0_46, %c0_47] : memref<1x8x32xbf16, #tpu.memory_space<vmem>>, vector<1x8x32xbf16>
      %106 = vector.shape_cast %105 : vector<1x8x32xbf16> to vector<8x32xbf16>
      %c0_48 = arith.constant 0 : index
      %c0_49 = arith.constant 0 : index
      %107 = vector.load %arg7[%c0_48, %c0_49] : memref<32x32xbf16, #tpu.memory_space<vmem>>, vector<32x32xbf16>
      %cst_50 = arith.constant dense<0.000000e+00> : vector<8x32xf32>
      %108 = tpu.matmul %106, %107, %cst_50 {dimension_numbers = #tpu.dot_dimension_numbers<[1], [0], [0], [1], [0, 0, 1, 1], [], []>} : vector<8x32xbf16>, vector<32x32xbf16>, vector<8x32xf32> -> vector<8x32xf32>
      %c0_51 = arith.constant 0 : index
      %c0_52 = arith.constant 0 : index
      %109 = vector.load %arg11[%c0_51, %c0_52] : memref<1x32xf32, #tpu.memory_space<vmem>>, vector<1x32xf32>
      %110 = vector.broadcast %109 : vector<1x32xf32> to vector<8x32xf32>
      %111 = arith.addf %108, %110 : vector<8x32xf32>
      %c0_53 = arith.constant 0 : index
      %c0_54 = arith.constant 0 : index
      %c0_55 = arith.constant 0 : index
      %112 = vector.load %arg4[%c0_53, %c0_54, %c0_55] : memref<1x8x32xbf16, #tpu.memory_space<vmem>>, vector<1x8x32xbf16>
      %113 = vector.shape_cast %112 : vector<1x8x32xbf16> to vector<8x32xbf16>
      %c0_56 = arith.constant 0 : index
      %c0_57 = arith.constant 0 : index
      %114 = vector.load %arg8[%c0_56, %c0_57] : memref<32x32xbf16, #tpu.memory_space<vmem>>, vector<32x32xbf16>
      %cst_58 = arith.constant dense<0.000000e+00> : vector<8x32xf32>
      %115 = tpu.matmul %113, %114, %cst_58 {dimension_numbers = #tpu.dot_dimension_numbers<[1], [0], [0], [1], [0, 0, 1, 1], [], []>} : vector<8x32xbf16>, vector<32x32xbf16>, vector<8x32xf32> -> vector<8x32xf32>
      %c0_59 = arith.constant 0 : index
      %c0_60 = arith.constant 0 : index
      %116 = vector.load %arg12[%c0_59, %c0_60] : memref<1x32xf32, #tpu.memory_space<vmem>>, vector<1x32xf32>
      %117 = vector.broadcast %116 : vector<1x32xf32> to vector<8x32xf32>
      %118 = arith.addf %115, %117 : vector<8x32xf32>
      %119 = arith.truncf %111 : vector<8x32xf32> to vector<8x32xbf16>
      %c0_61 = arith.constant 0 : index
      %c0_62 = arith.constant 0 : index
      %120 = vector.load %arg15[%c0_61, %c0_62] : memref<8x32xbf16, #tpu.memory_space<vmem>>, vector<8x32xbf16>
      tpu.vector_store %arg15[%c0_61, %c0_62], %119 {strides = array<i32>} : memref<8x32xbf16, #tpu.memory_space<vmem>>, vector<8x32xbf16>,
      %121 = arith.truncf %118 : vector<8x32xf32> to vector<8x32xbf16>
      %c0_63 = arith.constant 0 : index
      %c0_64 = arith.constant 0 : index
      %122 = vector.load %arg16[%c0_63, %c0_64] : memref<8x32xbf16, #tpu.memory_space<vmem>>, vector<8x32xbf16>
      tpu.vector_store %arg16[%c0_63, %c0_64], %121 {strides = array<i32>} : memref<8x32xbf16, #tpu.memory_space<vmem>>, vector<8x32xbf16>,
    } else {
    }
    %c0 = arith.constant 0 : index
    %c0_1 = arith.constant 0 : index
    %c0_2 = arith.constant 0 : index
    %3 = vector.load %arg2[%c0, %c0_1, %c0_2] : memref<1x8x32xbf16, #tpu.memory_space<vmem>>, vector<1x8x32xbf16>
    %4 = vector.shape_cast %3 : vector<1x8x32xbf16> to vector<8x32xbf16>
    %c0_3 = arith.constant 0 : index
    %c0_4 = arith.constant 0 : index
    %5 = vector.load %arg6[%c0_3, %c0_4] : memref<32x32xbf16, #tpu.memory_space<vmem>>, vector<32x32xbf16>
    %cst = arith.constant dense<0.000000e+00> : vector<8x32xf32>
    %6 = tpu.matmul %4, %5, %cst {dimension_numbers = #tpu.dot_dimension_numbers<[1], [0], [0], [1], [0, 0, 1, 1], [], []>} : vector<8x32xbf16>, vector<32x32xbf16>, vector<8x32xf32> -> vector<8x32xf32>
    %c0_5 = arith.constant 0 : index
    %c0_6 = arith.constant 0 : index
    %7 = vector.load %arg10[%c0_5, %c0_6] : memref<1x32xf32, #tpu.memory_space<vmem>>, vector<1x32xf32>
    %8 = vector.broadcast %7 : vector<1x32xf32> to vector<8x32xf32>
    %9 = arith.addf %6, %8 : vector<8x32xf32>
    %10 = arith.truncf %9 : vector<8x32xf32> to vector<8x32xbf16>
    %c0_7 = arith.constant 0 : index
    %c0_8 = arith.constant 0 : index
    %11 = vector.load %arg15[%c0_7, %c0_8] : memref<8x32xbf16, #tpu.memory_space<vmem>>, vector<8x32xbf16>
    %c0_9 = arith.constant 0 : index
    %c0_10 = arith.constant 0 : index
    %12 = vector.load %arg16[%c0_9, %c0_10] : memref<8x32xbf16, #tpu.memory_space<vmem>>, vector<8x32xbf16>
    %c0_11 = arith.constant 0 : index
    %c0_12 = arith.constant 0 : index
    %c0_13 = arith.constant 0 : index
    %13 = vector.load %arg5[%c0_11, %c0_12, %c0_13] : memref<1x8x8xi8, #tpu.memory_space<vmem>>, vector<1x8x8xi8>
    %14 = vector.shape_cast %13 : vector<1x8x8xi8> to vector<8x8xi8>
    %15 = vector.extract_strided_slice %10 {offsets = [0, 0], sizes = [8, 8], strides = [1, 1]} : vector<8x32xbf16> to vector<8x8xbf16>
    %16 = vector.extract_strided_slice %11 {offsets = [0, 0], sizes = [8, 8], strides = [1, 1]} : vector<8x32xbf16> to vector<8x8xbf16>
    %17 = vector.extract_strided_slice %12 {offsets = [0, 0], sizes = [8, 8], strides = [1, 1]} : vector<8x32xbf16> to vector<8x8xbf16>
    %cst_14 = arith.constant dense<0.000000e+00> : vector<8x8xf32>
    %18 = tpu.matmul %15, %16, %cst_14 {dimension_numbers = #tpu.dot_dimension_numbers<[1], [1], [0], [0], [0, 0, 1, 0], [], []>} : vector<8x8xbf16>, vector<8x8xbf16>, vector<8x8xf32> -> vector<8x8xf32>
    %c0_i8 = arith.constant 0 : i8
    %19 = vector.broadcast %c0_i8 : i8 to vector<8x8xi8>
    %20 = arith.cmpi ne, %14, %19 : vector<8x8xi8>
    %cst_15 = arith.constant -1.000000e+04 : f32
    %21 = vector.broadcast %cst_15 : f32 to vector<8x8xf32>
    %22 = arith.select %20, %21, %18 : vector<8x8xi1>, vector<8x8xf32>
    %cst_16 = arith.constant dense<0xFF800000> : vector<8xf32>
    %23 = vector.multi_reduction <maximumf>, %22, %cst_16 [1] : vector<8x8xf32> to vector<8xf32>
    %24 = vector.shape_cast %23 : vector<8xf32> to vector<8x1xf32>
    %25 = vector.broadcast %24 : vector<8x1xf32> to vector<8x8xf32>
    %26 = arith.subf %22, %25 : vector<8x8xf32>
    %27 = math.exp %26 : vector<8x8xf32>
    %cst_17 = arith.constant dense<0.000000e+00> : vector<8xf32>
    %28 = vector.multi_reduction <add>, %27, %cst_17 [1] : vector<8x8xf32> to vector<8xf32>
    %29 = vector.shape_cast %28 : vector<8xf32> to vector<8x1xf32>
    %30 = tpu.reciprocal %29 {approx = true} : vector<8x1xf32> -> vector<8x1xf32>
    %31 = vector.broadcast %30 : vector<8x1xf32> to vector<8x8xf32>
    %32 = arith.mulf %27, %31 : vector<8x8xf32>
    %33 = arith.truncf %32 : vector<8x8xf32> to vector<8x8xbf16>
    %cst_18 = arith.constant dense<0.000000e+00> : vector<8x8xf32>
    %34 = tpu.matmul %33, %17, %cst_18 {dimension_numbers = #tpu.dot_dimension_numbers<[1], [0], [0], [1], [0, 0, 1, 1], [], []>} : vector<8x8xbf16>, vector<8x8xbf16>, vector<8x8xf32> -> vector<8x8xf32>
    %35 = vector.extract_strided_slice %10 {offsets = [0, 8], sizes = [8, 8], strides = [1, 1]} : vector<8x32xbf16> to vector<8x8xbf16>
    %36 = vector.extract_strided_slice %11 {offsets = [0, 8], sizes = [8, 8], strides = [1, 1]} : vector<8x32xbf16> to vector<8x8xbf16>
    %37 = vector.extract_strided_slice %12 {offsets = [0, 8], sizes = [8, 8], strides = [1, 1]} : vector<8x32xbf16> to vector<8x8xbf16>
    %cst_19 = arith.constant dense<0.000000e+00> : vector<8x8xf32>
    %38 = tpu.matmul %35, %36, %cst_19 {dimension_numbers = #tpu.dot_dimension_numbers<[1], [1], [0], [0], [0, 0, 1, 0], [], []>} : vector<8x8xbf16>, vector<8x8xbf16>, vector<8x8xf32> -> vector<8x8xf32>
    %c0_i8_20 = arith.constant 0 : i8
    %39 = vector.broadcast %c0_i8_20 : i8 to vector<8x8xi8>
    %40 = arith.cmpi ne, %14, %39 : vector<8x8xi8>
    %cst_21 = arith.constant -1.000000e+04 : f32
    %41 = vector.broadcast %cst_21 : f32 to vector<8x8xf32>
    %42 = arith.select %40, %41, %38 : vector<8x8xi1>, vector<8x8xf32>
    %cst_22 = arith.constant dense<0xFF800000> : vector<8xf32>
    %43 = vector.multi_reduction <maximumf>, %42, %cst_22 [1] : vector<8x8xf32> to vector<8xf32>
    %44 = vector.shape_cast %43 : vector<8xf32> to vector<8x1xf32>
    %45 = vector.broadcast %44 : vector<8x1xf32> to vector<8x8xf32>
    %46 = arith.subf %42, %45 : vector<8x8xf32>
    %47 = math.exp %46 : vector<8x8xf32>
    %cst_23 = arith.constant dense<0.000000e+00> : vector<8xf32>
    %48 = vector.multi_reduction <add>, %47, %cst_23 [1] : vector<8x8xf32> to vector<8xf32>
    %49 = vector.shape_cast %48 : vector<8xf32> to vector<8x1xf32>
    %50 = tpu.reciprocal %49 {approx = true} : vector<8x1xf32> -> vector<8x1xf32>
    %51 = vector.broadcast %50 : vector<8x1xf32> to vector<8x8xf32>
    %52 = arith.mulf %47, %51 : vector<8x8xf32>
    %53 = arith.truncf %52 : vector<8x8xf32> to vector<8x8xbf16>
    %cst_24 = arith.constant dense<0.000000e+00> : vector<8x8xf32>
    %54 = tpu.matmul %53, %37, %cst_24 {dimension_numbers = #tpu.dot_dimension_numbers<[1], [0], [0], [1], [0, 0, 1, 1], [], []>} : vector<8x8xbf16>, vector<8x8xbf16>, vector<8x8xf32> -> vector<8x8xf32>
    %55 = vector.extract_strided_slice %10 {offsets = [0, 16], sizes = [8, 8], strides = [1, 1]} : vector<8x32xbf16> to vector<8x8xbf16>
    %56 = vector.extract_strided_slice %11 {offsets = [0, 16], sizes = [8, 8], strides = [1, 1]} : vector<8x32xbf16> to vector<8x8xbf16>
    %57 = vector.extract_strided_slice %12 {offsets = [0, 16], sizes = [8, 8], strides = [1, 1]} : vector<8x32xbf16> to vector<8x8xbf16>
    %cst_25 = arith.constant dense<0.000000e+00> : vector<8x8xf32>
    %58 = tpu.matmul %55, %56, %cst_25 {dimension_numbers = #tpu.dot_dimension_numbers<[1], [1], [0], [0], [0, 0, 1, 0], [], []>} : vector<8x8xbf16>, vector<8x8xbf16>, vector<8x8xf32> -> vector<8x8xf32>
    %c0_i8_26 = arith.constant 0 : i8
    %59 = vector.broadcast %c0_i8_26 : i8 to vector<8x8xi8>
    %60 = arith.cmpi ne, %14, %59 : vector<8x8xi8>
    %cst_27 = arith.constant -1.000000e+04 : f32
    %61 = vector.broadcast %cst_27 : f32 to vector<8x8xf32>
    %62 = arith.select %60, %61, %58 : vector<8x8xi1>, vector<8x8xf32>
    %cst_28 = arith.constant dense<0xFF800000> : vector<8xf32>
    %63 = vector.multi_reduction <maximumf>, %62, %cst_28 [1] : vector<8x8xf32> to vector<8xf32>
    %64 = vector.shape_cast %63 : vector<8xf32> to vector<8x1xf32>
    %65 = vector.broadcast %64 : vector<8x1xf32> to vector<8x8xf32>
    %66 = arith.subf %62, %65 : vector<8x8xf32>
    %67 = math.exp %66 : vector<8x8xf32>
    %cst_29 = arith.constant dense<0.000000e+00> : vector<8xf32>
    %68 = vector.multi_reduction <add>, %67, %cst_29 [1] : vector<8x8xf32> to vector<8xf32>
    %69 = vector.shape_cast %68 : vector<8xf32> to vector<8x1xf32>
    %70 = tpu.reciprocal %69 {approx = true} : vector<8x1xf32> -> vector<8x1xf32>
    %71 = vector.broadcast %70 : vector<8x1xf32> to vector<8x8xf32>
    %72 = arith.mulf %67, %71 : vector<8x8xf32>
    %73 = arith.truncf %72 : vector<8x8xf32> to vector<8x8xbf16>
    %cst_30 = arith.constant dense<0.000000e+00> : vector<8x8xf32>
    %74 = tpu.matmul %73, %57, %cst_30 {dimension_numbers = #tpu.dot_dimension_numbers<[1], [0], [0], [1], [0, 0, 1, 1], [], []>} : vector<8x8xbf16>, vector<8x8xbf16>, vector<8x8xf32> -> vector<8x8xf32>
    %75 = vector.extract_strided_slice %10 {offsets = [0, 24], sizes = [8, 8], strides = [1, 1]} : vector<8x32xbf16> to vector<8x8xbf16>
    %76 = vector.extract_strided_slice %11 {offsets = [0, 24], sizes = [8, 8], strides = [1, 1]} : vector<8x32xbf16> to vector<8x8xbf16>
    %77 = vector.extract_strided_slice %12 {offsets = [0, 24], sizes = [8, 8], strides = [1, 1]} : vector<8x32xbf16> to vector<8x8xbf16>
    %cst_31 = arith.constant dense<0.000000e+00> : vector<8x8xf32>
    %78 = tpu.matmul %75, %76, %cst_31 {dimension_numbers = #tpu.dot_dimension_numbers<[1], [1], [0], [0], [0, 0, 1, 0], [], []>} : vector<8x8xbf16>, vector<8x8xbf16>, vector<8x8xf32> -> vector<8x8xf32>
    %c0_i8_32 = arith.constant 0 : i8
    %79 = vector.broadcast %c0_i8_32 : i8 to vector<8x8xi8>
    %80 = arith.cmpi ne, %14, %79 : vector<8x8xi8>
    %cst_33 = arith.constant -1.000000e+04 : f32
    %81 = vector.broadcast %cst_33 : f32 to vector<8x8xf32>
    %82 = arith.select %80, %81, %78 : vector<8x8xi1>, vector<8x8xf32>
    %cst_34 = arith.constant dense<0xFF800000> : vector<8xf32>
    %83 = vector.multi_reduction <maximumf>, %82, %cst_34 [1] : vector<8x8xf32> to vector<8xf32>
    %84 = vector.shape_cast %83 : vector<8xf32> to vector<8x1xf32>
    %85 = vector.broadcast %84 : vector<8x1xf32> to vector<8x8xf32>
    %86 = arith.subf %82, %85 : vector<8x8xf32>
    %87 = math.exp %86 : vector<8x8xf32>
    %cst_35 = arith.constant dense<0.000000e+00> : vector<8xf32>
    %88 = vector.multi_reduction <add>, %87, %cst_35 [1] : vector<8x8xf32> to vector<8xf32>
    %89 = vector.shape_cast %88 : vector<8xf32> to vector<8x1xf32>
    %90 = tpu.reciprocal %89 {approx = true} : vector<8x1xf32> -> vector<8x1xf32>
    %91 = vector.broadcast %90 : vector<8x1xf32> to vector<8x8xf32>
    %92 = arith.mulf %87, %91 : vector<8x8xf32>
    %93 = arith.truncf %92 : vector<8x8xf32> to vector<8x8xbf16>
    %cst_36 = arith.constant dense<0.000000e+00> : vector<8x8xf32>
    %94 = tpu.matmul %93, %77, %cst_36 {dimension_numbers = #tpu.dot_dimension_numbers<[1], [0], [0], [1], [0, 0, 1, 1], [], []>} : vector<8x8xbf16>, vector<8x8xbf16>, vector<8x8xf32> -> vector<8x8xf32>
    %95 = tpu.concatenate %34, %54, %74, %94 in 1 : vector<8x8xf32>, vector<8x8xf32>, vector<8x8xf32>, vector<8x8xf32> -> vector<8x32xf32>
    %96 = arith.truncf %95 : vector<8x32xf32> to vector<8x32xbf16>
    %c0_37 = arith.constant 0 : index
    %c0_38 = arith.constant 0 : index
    %97 = vector.load %arg9[%c0_37, %c0_38] : memref<32x32xbf16, #tpu.memory_space<vmem>>, vector<32x32xbf16>
    %cst_39 = arith.constant dense<0.000000e+00> : vector<8x32xf32>
    %98 = tpu.matmul %96, %97, %cst_39 {dimension_numbers = #tpu.dot_dimension_numbers<[1], [0], [0], [1], [0, 0, 1, 1], [], []>} : vector<8x32xbf16>, vector<32x32xbf16>, vector<8x32xf32> -> vector<8x32xf32>
    %c0_40 = arith.constant 0 : index
    %c0_41 = arith.constant 0 : index
    %99 = vector.load %arg13[%c0_40, %c0_41] : memref<1x32xf32, #tpu.memory_space<vmem>>, vector<1x32xf32>
    %100 = vector.broadcast %99 : vector<1x32xf32> to vector<8x32xf32>
    %101 = arith.addf %98, %100 : vector<8x32xf32>
    %c0_42 = arith.constant 0 : index
    %c0_43 = arith.constant 0 : index
    %c0_44 = arith.constant 0 : index
    %102 = vector.load %arg14[%c0_42, %c0_43, %c0_44] : memref<1x8x32xf32, #tpu.memory_space<vmem>>, vector<1x8x32xf32>
    %103 = vector.shape_cast %102 : vector<1x8x32xf32> to vector<8x32xf32>
    %104 = vector.shape_cast %101 : vector<8x32xf32> to vector<1x8x32xf32>
    tpu.vector_store %arg14[%c0_42, %c0_43, %c0_44], %104 {strides = array<i32>} : memref<1x8x32xf32, #tpu.memory_space<vmem>>, vector<1x8x32xf32>,
    return
  }
  func.func @transform_0(%arg0: i32, %arg1: i32) -> (i32, i32, i32) {
    %c0_i32 = arith.constant 0 : i32
    %c0_i32_0 = arith.constant 0 : i32
    return %arg0, %arg1, %c0_i32 : i32, i32, i32
  }
  func.func @transform_1(%arg0: i32, %arg1: i32) -> (i32, i32, i32) {
    %c0_i32 = arith.constant 0 : i32
    %c0_i32_0 = arith.constant 0 : i32
    %c0_i32_1 = arith.constant 0 : i32
    return %arg0, %c0_i32, %c0_i32_0 : i32, i32, i32
  }
  func.func @transform_2(%arg0: i32, %arg1: i32) -> (i32, i32, i32) {
    %c0_i32 = arith.constant 0 : i32
    %c0_i32_0 = arith.constant 0 : i32
    %c0_i32_1 = arith.constant 0 : i32
    return %arg0, %c0_i32, %c0_i32_0 : i32, i32, i32
  }
  func.func @transform_3(%arg0: i32, %arg1: i32) -> (i32, i32, i32) {
    %c0_i32 = arith.constant 0 : i32
    %c0_i32_0 = arith.constant 0 : i32
    return %arg0, %arg1, %c0_i32 : i32, i32, i32
  }
  func.func @transform_4(%arg0: i32, %arg1: i32) -> (i32, i32) {
    %c0_i32 = arith.constant 0 : i32
    %c0_i32_0 = arith.constant 0 : i32
    %c0_i32_1 = arith.constant 0 : i32
    return %c0_i32, %c0_i32_0 : i32, i32
  }
  func.func @transform_5(%arg0: i32, %arg1: i32) -> (i32, i32) {
    %c0_i32 = arith.constant 0 : i32
    %c0_i32_0 = arith.constant 0 : i32
    %c0_i32_1 = arith.constant 0 : i32
    return %c0_i32, %c0_i32_0 : i32, i32
  }
  func.func @transform_6(%arg0: i32, %arg1: i32) -> (i32, i32) {
    %c0_i32 = arith.constant 0 : i32
    %c0_i32_0 = arith.constant 0 : i32
    %c0_i32_1 = arith.constant 0 : i32
    return %c0_i32, %c0_i32_0 : i32, i32
  }
  func.func @transform_7(%arg0: i32, %arg1: i32) -> (i32, i32) {
    %c0_i32 = arith.constant 0 : i32
    %c0_i32_0 = arith.constant 0 : i32
    %c0_i32_1 = arith.constant 0 : i32
    return %c0_i32, %c0_i32_0 : i32, i32
  }
  func.func @transform_8(%arg0: i32, %arg1: i32) -> (i32, i32) {
    %c0_i32 = arith.constant 0 : i32
    %c0_i32_0 = arith.constant 0 : i32
    %c0_i32_1 = arith.constant 0 : i32
    return %c0_i32, %c0_i32_0 : i32, i32
  }
  func.func @transform_9(%arg0: i32, %arg1: i32) -> (i32, i32) {
    %c0_i32 = arith.constant 0 : i32
    %c0_i32_0 = arith.constant 0 : i32
    %c0_i32_1 = arith.constant 0 : i32
    return %c0_i32, %c0_i32_0 : i32, i32
  }
  func.func @transform_10(%arg0: i32, %arg1: i32) -> (i32, i32) {
    %c0_i32 = arith.constant 0 : i32
    %c0_i32_0 = arith.constant 0 : i32
    %c0_i32_1 = arith.constant 0 : i32
    return %c0_i32, %c0_i32_0 : i32, i32
  }
  func.func @transform_11(%arg0: i32, %arg1: i32) -> (i32, i32) {
    %c0_i32 = arith.constant 0 : i32
    %c0_i32_0 = arith.constant 0 : i32
    %c0_i32_1 = arith.constant 0 : i32
    return %c0_i32, %c0_i32_0 : i32, i32
  }
  func.func @transform_12(%arg0: i32, %arg1: i32) -> (i32, i32, i32) {
    %c0_i32 = arith.constant 0 : i32
    %c0_i32_0 = arith.constant 0 : i32
    return %arg0, %arg1, %c0_i32 : i32, i32, i32
  }
}

</mosaic_0001>

<llo_original>
// kernel: tpu_custom_call.1
$region0: #{tpu_custom_call.1}
  #allocation0 [shape = 'u32[]', space=smem, size = 0x4, offset = 0x4, fixed_abs, tag = 'smem constant byte address 0x4 - core index']
  #allocation1 [shape = 'u32[144,128]{1,0:T(1,128)}', space=vmem, size = 0x12000, scoped, tag = 'internal scratch']
  #allocation2 [shape = 'bf16[8,32]{1,0:T(8,128)(2,1)}', space=vmem, size = 0x800, scoped, tag = 'scratch operand']
  #allocation3 [shape = 'bf16[8,32]{1,0:T(8,128)(2,1)}', space=vmem, size = 0x800, scoped, tag = 'scratch operand']
  %s0 = inlined_call_operand.hbm [shape: bf16[2,8,32], index: 0, kind: input, shape index: {}]
  %s1 = inlined_call_operand.hbm [shape: bf16[2,8,32], index: 1, kind: input, shape index: {}]
  %s2 = inlined_call_operand.hbm [shape: bf16[2,8,32], index: 2, kind: input, shape index: {}]
  %s3 = inlined_call_operand.hbm [shape: s8[2,8,8], index: 3, kind: input, shape index: {}]
  %s4 = inlined_call_operand.hbm [shape: bf16[32,32], index: 4, kind: input, shape index: {}]
  %s5 = inlined_call_operand.hbm [shape: bf16[32,32], index: 5, kind: input, shape index: {}]
  %s6 = inlined_call_operand.hbm [shape: bf16[32,32], index: 6, kind: input, shape index: {}]
  %s7 = inlined_call_operand.hbm [shape: bf16[32,32], index: 7, kind: input, shape index: {}]
  %s8 = inlined_call_operand.hbm [shape: f32[1,32], index: 8, kind: input, shape index: {}]
  %s9 = inlined_call_operand.hbm [shape: f32[1,32], index: 9, kind: input, shape index: {}]
  %s10 = inlined_call_operand.hbm [shape: f32[1,32], index: 10, kind: input, shape index: {}]
  %s11 = inlined_call_operand.hbm [shape: f32[1,32], index: 11, kind: input, shape index: {}]
  %s12 = inlined_call_operand.hbm [shape: f32[2,8,32], index: 12, kind: output, shape index: {}]
  %s13 = sld [smem:[#allocation0]]
  $region133: #{tpu_custom_call.1} parent=0
    _
  %s15 = ssub.s32 1, %s13
  %s16 = scalar_select 0, %s15, %s13
  $region1: #{tpu_custom_call.1} parent=0
    #allocation4 [shape = 'u8[4096]{0}', space=vmem, size = 0x1000, scoped, tag = 'input window, operand 0']
    #allocation5 [shape = 's32[2]{0}', space=sflag, size = 0x8, scoped, tag = 'scoped memory for tpu_custom_call.1']
    #allocation6 [shape = 's32[2]{0}', space=sflag, size = 0x8, scoped, tag = 'scoped memory for tpu_custom_call.1']
    #allocation7 [shape = 'u8[4096]{0}', space=vmem, size = 0x1000, scoped, tag = 'input window, operand 1']
    #allocation8 [shape = 's32[2]{0}', space=sflag, size = 0x8, scoped, tag = 'scoped memory for tpu_custom_call.1']
    #allocation9 [shape = 'u8[4096]{0}', space=vmem, size = 0x1000, scoped, tag = 'input window, operand 2']
    #allocation10 [shape = 'u8[2048]{0}', space=vmem, size = 0x800, scoped, tag = 'input window, operand 3']
    #allocation11 [shape = 's32[2]{0}', space=sflag, size = 0x8, scoped, tag = 'scoped memory for tpu_custom_call.1']
    #allocation12 [shape = 'u8[8192]{0}', space=vmem, size = 0x2000, scoped, tag = 'input window, operand 4, single buffered']
    #allocation13 [shape = 'u8[8192]{0}', space=vmem, size = 0x2000, scoped, tag = 'input window, operand 5, single buffered']
    #allocation14 [shape = 's32[1]{0}', space=sflag, size = 0x4, scoped, tag = 'scoped memory for tpu_custom_call.1']
    #allocation15 [shape = 'u8[8192]{0}', space=vmem, size = 0x2000, scoped, tag = 'input window, operand 6, single buffered']
    #allocation16 [shape = 'u8[8192]{0}', space=vmem, size = 0x2000, scoped, tag = 'input window, operand 7, single buffered']
    #allocation17 [shape = 's32[1]{0}', space=sflag, size = 0x4, scoped, tag = 'scoped memory for tpu_custom_call.1']
    #allocation18 [shape = 'u8[512]{0}', space=vmem, size = 0x400, scoped, tag = 'input window, operand 8, single buffered']
    #allocation19 [shape = 'u8[512]{0}', space=vmem, size = 0x400, scoped, tag = 'input window, operand 9, single buffered']
    #allocation20 [shape = 's32[1]{0}', space=sflag, size = 0x4, scoped, tag = 'scoped memory for tpu_custom_call.1']
    #allocation21 [shape = 'u8[512]{0}', space=vmem, size = 0x400, scoped, tag = 'input window, operand 10, single buffered']
    #allocation22 [shape = 'u8[512]{0}', space=vmem, size = 0x400, scoped, tag = 'input window, operand 11, single buffered']
    #allocation23 [shape = 's32[1]{0}', space=sflag, size = 0x4, scoped, tag = 'scoped memory for tpu_custom_call.1']
    #allocation24 [shape = 'u8[8192]{0}', space=vmem, size = 0x2000, scoped, tag = 'output window, operand 0']
    %17 = vsyncpa [#allocation5], 0
    %s18 = scalar_lea.sflag [#allocation5], 1
    %19 = vsyncpa %s18, 0
    %20 = vsyncpa [#allocation8], 0
    %s21 = scalar_lea.sflag [#allocation8], 1
    %22 = vsyncpa %s21, 0
    %23 = vsyncpa [#allocation11], 0
    %s24 = scalar_lea.sflag [#allocation11], 1
    %25 = vsyncpa %s24, 0
    %26 = vsyncpa [#allocation14], 0
    %27 = vsyncpa [#allocation17], 0
    %28 = vsyncpa [#allocation20], 0
    %29 = vsyncpa [#allocation23], 0
    %30 = vsyncpa [#allocation6], 0
    %s31 = scalar_lea.sflag [#allocation6], 1
    %32 = vsyncpa %s31, 0
    loop: start=0, step=1, limit=4
    $region2: #{tpu_custom_call.1} parent=1 // loop_pre_header
      _
    $region3: #{tpu_custom_call.1} parent=1 // loop_header
      %s34 = sphi 0, %s38
      %p35 = scmp.ge.s32.totalorder %s34, 4
      %s41 = sphi 0, %s53
      %s42 = sphi 0, %s49
      %s43 = sphi 0, %s41
      %s44 = sphi 0, %s42
      %s45 = sphi 0, %s43
      %s46 = sphi 0, %s44
      %s58 = sphi 0, %s60
      %s61 = sphi 0, %s58
      %s62 = sphi 0, %s61
      %s78 = sphi 0, %s62
      %s84 = sphi 0, %s86
      %s87 = sphi 0, %s84
      %s88 = sphi 0, %s87
      %s104 = sphi 0, %s88
      %s110 = sphi 0, %s112
      %s113 = sphi 0, %s110
      %s114 = sphi 0, %s113
      %s130 = sphi 0, %s114
      %s138 = sphi 0, %s140
      %s141 = sphi 0, %s138
      %s142 = sphi 0, %s141
      %s158 = sphi 0, %s142
      %s162 = sphi 0, %s162
      %s164 = sphi 0, %s162
      %s165 = sphi 0, %s164
      %s179 = sphi 0, %s165
      %s183 = sphi 0, %s183
      %s185 = sphi 0, %s183
      %s186 = sphi 0, %s185
      %s200 = sphi 0, %s186
      %s204 = sphi 0, %s204
      %s206 = sphi 0, %s204
      %s207 = sphi 0, %s206
      %s221 = sphi 0, %s207
      %s225 = sphi 0, %s225
      %s227 = sphi 0, %s225
      %s228 = sphi 0, %s227
      %s242 = sphi 0, %s228
      %s246 = sphi 0, %s246
      %s248 = sphi 0, %s246
      %s249 = sphi 0, %s248
      %s263 = sphi 0, %s249
      %s267 = sphi 0, %s267
      %s269 = sphi 0, %s267
      %s270 = sphi 0, %s269
      %s284 = sphi 0, %s270
      %s288 = sphi 0, %s288
      %s290 = sphi 0, %s288
      %s291 = sphi 0, %s290
      %s305 = sphi 0, %s291
      %s309 = sphi 0, %s309
      %s311 = sphi 0, %s309
      %s312 = sphi 0, %s311
      %s326 = sphi 0, %s312
      %s334 = sphi 0, %s336
      %s337 = sphi 0, %s334
      %s338 = sphi 0, %s337
      %s354 = sphi 0, %s338
    $region4: #{tpu_custom_call.1} parent=1 // loop_header_branch
      %37 = sbr.rel (%p35) target = $region8
    $region5: #{tpu_custom_call.1} parent=1 // loop_body
      %s39 = ssub.s32 %s34, 1
      %s40 = ssub.s32 %s34, 2
      %s47 = sadd.s32 1, %s42
      %p48 = scmp.ge.s32.totalorder %s47, 1
      %s49 = scalar_select %p48, 0, %s47
      %s50 = sadd.s32 1, %s41
      %s51 = scalar_select %p48, %s50, %s41
      %p52 = scmp.ge.s32.totalorder %s51, 2
      %s53 = scalar_select %p52, 0, %s51
      %s54 = ssub.s32 %s41, %s53
      %s55 = ssub.s32 %s42, %s49
      %s56 = sor.u32 %s54, %s55
      %p57 = scmp.eq.s32.totalorder %s56, 0
      %s59 = sadd.s32 %s58, 1
      %s60 = scalar_select %p57, %s58, %s59
      %p63 = pneg %p57
      %p64 = scmp.eq.s32.totalorder %s34, 1
      %p65 = por %p63, %p64
      %p66 = scmp.ne.s32.totalorder %s58, %s61
      %p67 = scmp.eq.s32.totalorder %s34, 0
      %p68 = por %p66, %p67
      %p69 = scmp.ne.s32.totalorder %s58, %s61
      %p70 = scmp.eq.s32.totalorder %s39, 1
      %p71 = por %p69, %p70
      %p72 = scmp.ne.s32.totalorder %s61, %s62
      %p73 = scmp.eq.s32.totalorder %s39, 0
      %p74 = por %p72, %p73
      %p75 = scmp.ne.s32.totalorder %s61, %s62
      %p76 = scmp.eq.s32.totalorder %s40, 1
      %p77 = por %p75, %p76
      %p79 = scmp.ne.s32.totalorder %s62, %s78
      %p80 = scmp.eq.s32.totalorder %s40, 0
      %p81 = por %p79, %p80
      %s82 = ssub.s32 %s41, %s53
      %p83 = scmp.eq.s32.totalorder %s82, 0
      %s85 = sadd.s32 %s84, 1
      %s86 = scalar_select %p83, %s84, %s85
      %p89 = pneg %p83
      %p90 = scmp.eq.s32.totalorder %s34, 1
      %p91 = por %p89, %p90
      %p92 = scmp.ne.s32.totalorder %s84, %s87
      %p93 = scmp.eq.s32.totalorder %s34, 0
      %p94 = por %p92, %p93
      %p95 = scmp.ne.s32.totalorder %s84, %s87
      %p96 = scmp.eq.s32.totalorder %s39, 1
      %p97 = por %p95, %p96
      %p98 = scmp.ne.s32.totalorder %s87, %s88
      %p99 = scmp.eq.s32.totalorder %s39, 0
      %p100 = por %p98, %p99
      %p101 = scmp.ne.s32.totalorder %s87, %s88
      %p102 = scmp.eq.s32.totalorder %s40, 1
      %p103 = por %p101, %p102
      %p105 = scmp.ne.s32.totalorder %s88, %s104
      %p106 = scmp.eq.s32.totalorder %s40, 0
      %p107 = por %p105, %p106
      %s108 = ssub.s32 %s41, %s53
      %p109 = scmp.eq.s32.totalorder %s108, 0
      %s111 = sadd.s32 %s110, 1
      %s112 = scalar_select %p109, %s110, %s111
      %p115 = pneg %p109
      %p116 = scmp.eq.s32.totalorder %s34, 1
      %p117 = por %p115, %p116
      %p118 = scmp.ne.s32.totalorder %s110, %s113
      %p119 = scmp.eq.s32.totalorder %s34, 0
      %p120 = por %p118, %p119
      %p121 = scmp.ne.s32.totalorder %s110, %s113
      %p122 = scmp.eq.s32.totalorder %s39, 1
      %p123 = por %p121, %p122
      %p124 = scmp.ne.s32.totalorder %s113, %s114
      %p125 = scmp.eq.s32.totalorder %s39, 0
      %p126 = por %p124, %p125
      %p127 = scmp.ne.s32.totalorder %s113, %s114
      %p128 = scmp.eq.s32.totalorder %s40, 1
      %p129 = por %p127, %p128
      %p131 = scmp.ne.s32.totalorder %s114, %s130
      %p132 = scmp.eq.s32.totalorder %s40, 0
      %p133 = por %p131, %p132
      %s134 = ssub.s32 %s41, %s53
      %s135 = ssub.s32 %s42, %s49
      %s136 = sor.u32 %s134, %s135
      %p137 = scmp.eq.s32.totalorder %s136, 0
      %s139 = sadd.s32 %s138, 1
      %s140 = scalar_select %p137, %s138, %s139
      %p143 = pneg %p137
      %p144 = scmp.eq.s32.totalorder %s34, 1
      %p145 = por %p143, %p144
      %p146 = scmp.ne.s32.totalorder %s138, %s141
      %p147 = scmp.eq.s32.totalorder %s34, 0
      %p148 = por %p146, %p147
      %p149 = scmp.ne.s32.totalorder %s138, %s141
      %p150 = scmp.eq.s32.totalorder %s39, 1
      %p151 = por %p149, %p150
      %p152 = scmp.ne.s32.totalorder %s141, %s142
      %p153 = scmp.eq.s32.totalorder %s39, 0
      %p154 = por %p152, %p153
      %p155 = scmp.ne.s32.totalorder %s141, %s142
      %p156 = scmp.eq.s32.totalorder %s40, 1
      %p157 = por %p155, %p156
      %p159 = scmp.ne.s32.totalorder %s142, %s158
      %p160 = scmp.eq.s32.totalorder %s40, 0
      %p161 = por %p159, %p160
      %s163 = sadd.s32 %s162, 1
      %p166 = scmp.eq.s32.totalorder %s34, 1
      %p167 = scmp.ne.s32.totalorder %s162, %s164
      %p168 = scmp.eq.s32.totalorder %s34, 0
      %p169 = por %p167, %p168
      %p170 = scmp.ne.s32.totalorder %s162, %s164
      %p171 = scmp.eq.s32.totalorder %s39, 1
      %p172 = por %p170, %p171
      %p173 = scmp.ne.s32.totalorder %s164, %s165
      %p174 = scmp.eq.s32.totalorder %s39, 0
      %p175 = por %p173, %p174
      %p176 = scmp.ne.s32.totalorder %s164, %s165
      %p177 = scmp.eq.s32.totalorder %s40, 1
      %p178 = por %p176, %p177
      %p180 = scmp.ne.s32.totalorder %s165, %s179
      %p181 = scmp.eq.s32.totalorder %s40, 0
      %p182 = por %p180, %p181
      %s184 = sadd.s32 %s183, 1
      %p187 = scmp.eq.s32.totalorder %s34, 1
      %p188 = scmp.ne.s32.totalorder %s183, %s185
      %p189 = scmp.eq.s32.totalorder %s34, 0
      %p190 = por %p188, %p189
      %p191 = scmp.ne.s32.totalorder %s183, %s185
      %p192 = scmp.eq.s32.totalorder %s39, 1
      %p193 = por %p191, %p192
      %p194 = scmp.ne.s32.totalorder %s185, %s186
      %p195 = scmp.eq.s32.totalorder %s39, 0
      %p196 = por %p194, %p195
      %p197 = scmp.ne.s32.totalorder %s185, %s186
      %p198 = scmp.eq.s32.totalorder %s40, 1
      %p199 = por %p197, %p198
      %p201 = scmp.ne.s32.totalorder %s186, %s200
      %p202 = scmp.eq.s32.totalorder %s40, 0
      %p203 = por %p201, %p202
      %s205 = sadd.s32 %s204, 1
      %p208 = scmp.eq.s32.totalorder %s34, 1
      %p209 = scmp.ne.s32.totalorder %s204, %s206
      %p210 = scmp.eq.s32.totalorder %s34, 0
      %p211 = por %p209, %p210
      %p212 = scmp.ne.s32.totalorder %s204, %s206
      %p213 = scmp.eq.s32.totalorder %s39, 1
      %p214 = por %p212, %p213
      %p215 = scmp.ne.s32.totalorder %s206, %s207
      %p216 = scmp.eq.s32.totalorder %s39, 0
      %p217 = por %p215, %p216
      %p218 = scmp.ne.s32.totalorder %s206, %s207
      %p219 = scmp.eq.s32.totalorder %s40, 1
      %p220 = por %p218, %p219
      %p222 = scmp.ne.s32.totalorder %s207, %s221
      %p223 = scmp.eq.s32.totalorder %s40, 0
      %p224 = por %p222, %p223
      %s226 = sadd.s32 %s225, 1
      %p229 = scmp.eq.s32.totalorder %s34, 1
      %p230 = scmp.ne.s32.totalorder %s225, %s227
      %p231 = scmp.eq.s32.totalorder %s34, 0
      %p232 = por %p230, %p231
      %p233 = scmp.ne.s32.totalorder %s225, %s227
      %p234 = scmp.eq.s32.totalorder %s39, 1
      %p235 = por %p233, %p234
      %p236 = scmp.ne.s32.totalorder %s227, %s228
      %p237 = scmp.eq.s32.totalorder %s39, 0
      %p238 = por %p236, %p237
      %p239 = scmp.ne.s32.totalorder %s227, %s228
      %p240 = scmp.eq.s32.totalorder %s40, 1
      %p241 = por %p239, %p240
      %p243 = scmp.ne.s32.totalorder %s228, %s242
      %p244 = scmp.eq.s32.totalorder %s40, 0
      %p245 = por %p243, %p244
      %s247 = sadd.s32 %s246, 1
      %p250 = scmp.eq.s32.totalorder %s34, 1
      %p251 = scmp.ne.s32.totalorder %s246, %s248
      %p252 = scmp.eq.s32.totalorder %s34, 0
      %p253 = por %p251, %p252
      %p254 = scmp.ne.s32.totalorder %s246, %s248
      %p255 = scmp.eq.s32.totalorder %s39, 1
      %p256 = por %p254, %p255
      %p257 = scmp.ne.s32.totalorder %s248, %s249
      %p258 = scmp.eq.s32.totalorder %s39, 0
      %p259 = por %p257, %p258
      %p260 = scmp.ne.s32.totalorder %s248, %s249
      %p261 = scmp.eq.s32.totalorder %s40, 1
      %p262 = por %p260, %p261
      %p264 = scmp.ne.s32.totalorder %s249, %s263
      %p265 = scmp.eq.s32.totalorder %s40, 0
      %p266 = por %p264, %p265
      %s268 = sadd.s32 %s267, 1
      %p271 = scmp.eq.s32.totalorder %s34, 1
      %p272 = scmp.ne.s32.totalorder %s267, %s269
      %p273 = scmp.eq.s32.totalorder %s34, 0
      %p274 = por %p272, %p273
      %p275 = scmp.ne.s32.totalorder %s267, %s269
      %p276 = scmp.eq.s32.totalorder %s39, 1
      %p277 = por %p275, %p276
      %p278 = scmp.ne.s32.totalorder %s269, %s270
      %p279 = scmp.eq.s32.totalorder %s39, 0
      %p280 = por %p278, %p279
      %p281 = scmp.ne.s32.totalorder %s269, %s270
      %p282 = scmp.eq.s32.totalorder %s40, 1
      %p283 = por %p281, %p282
      %p285 = scmp.ne.s32.totalorder %s270, %s284
      %p286 = scmp.eq.s32.totalorder %s40, 0
      %p287 = por %p285, %p286
      %s289 = sadd.s32 %s288, 1
      %p292 = scmp.eq.s32.totalorder %s34, 1
      %p293 = scmp.ne.s32.totalorder %s288, %s290
      %p294 = scmp.eq.s32.totalorder %s34, 0
      %p295 = por %p293, %p294
      %p296 = scmp.ne.s32.totalorder %s288, %s290
      %p297 = scmp.eq.s32.totalorder %s39, 1
      %p298 = por %p296, %p297
      %p299 = scmp.ne.s32.totalorder %s290, %s291
      %p300 = scmp.eq.s32.totalorder %s39, 0
      %p301 = por %p299, %p300
      %p302 = scmp.ne.s32.totalorder %s290, %s291
      %p303 = scmp.eq.s32.totalorder %s40, 1
      %p304 = por %p302, %p303
      %p306 = scmp.ne.s32.totalorder %s291, %s305
      %p307 = scmp.eq.s32.totalorder %s40, 0
      %p308 = por %p306, %p307
      %s310 = sadd.s32 %s309, 1
      %p313 = scmp.eq.s32.totalorder %s34, 1
      %p314 = scmp.ne.s32.totalorder %s309, %s311
      %p315 = scmp.eq.s32.totalorder %s34, 0
      %p316 = por %p314, %p315
      %p317 = scmp.ne.s32.totalorder %s309, %s311
      %p318 = scmp.eq.s32.totalorder %s39, 1
      %p319 = por %p317, %p318
      %p320 = scmp.ne.s32.totalorder %s311, %s312
      %p321 = scmp.eq.s32.totalorder %s39, 0
      %p322 = por %p320, %p321
      %p323 = scmp.ne.s32.totalorder %s311, %s312
      %p324 = scmp.eq.s32.totalorder %s40, 1
      %p325 = por %p323, %p324
      %p327 = scmp.ne.s32.totalorder %s312, %s326
      %p328 = scmp.eq.s32.totalorder %s40, 0
      %p329 = por %p327, %p328
      %s330 = ssub.s32 %s41, %s53
      %s331 = ssub.s32 %s42, %s49
      %s332 = sor.u32 %s330, %s331
      %p333 = scmp.eq.s32.totalorder %s332, 0
      %s335 = sadd.s32 %s334, 1
      %s336 = scalar_select %p333, %s334, %s335
      %p339 = pneg %p333
      %p340 = scmp.eq.s32.totalorder %s34, 1
      %p341 = por %p339, %p340
      %p342 = scmp.ne.s32.totalorder %s334, %s337
      %p343 = scmp.eq.s32.totalorder %s34, 0
      %p344 = por %p342, %p343
      %p345 = scmp.ne.s32.totalorder %s334, %s337
      %p346 = scmp.eq.s32.totalorder %s39, 1
      %p347 = por %p345, %p346
      %p348 = scmp.ne.s32.totalorder %s337, %s338
      %p349 = scmp.eq.s32.totalorder %s39, 0
      %p350 = por %p348, %p349
      %p351 = scmp.ne.s32.totalorder %s337, %s338
      %p352 = scmp.eq.s32.totalorder %s40, 1
      %p353 = por %p351, %p352
      %p355 = scmp.ne.s32.totalorder %s338, %s354
      %p356 = scmp.eq.s32.totalorder %s40, 0
      %p357 = por %p355, %p356
      %p358 = scmp.le.s32.totalorder 1, %s34
      %p359 = scmp.lt.s32.totalorder %s34, 3
      %p360 = pnand %p358, %p359
      %p361 = pneg %p360
      // Predicated region
      $region9: #{tpu_custom_call.1} parent=5 // pred_check
        _
      $region10: #{tpu_custom_call.1} parent=5 // pred_check_branch
        %363 = sbr.rel (%p360) target = $region12
      $region11: #{tpu_custom_call.1} parent=5 // pred_region
        %s364 = ssub.s32 %s34, 1
        // Predicated region
        $region13: #{tpu_custom_call.1} parent=11 // pred_check
          %p365 = pneg %p175
        $region14: #{tpu_custom_call.1} parent=11 // pred_check_branch
          %367 = sbr.rel (%p365) target = $region16
        $region15: #{tpu_custom_call.1} parent=11 // pred_region
          %s369 = ssub.s32 256, 256
          %370 = vsyncadd [#allocation11], %s369
          %s371 = sshll.u32 [#allocation12], 4
          %s372 = int_to_ptr.vmem [resolvable:$true] %s371
          %377 = dma.hbm_to_vmem [thread:$0]  %s4, 256, %s372, [#allocation11], 64, 64, 4
        $region16: #{tpu_custom_call.1} parent=11 // pred_fallthru
          _
        // Predicated region
        $region17: #{tpu_custom_call.1} parent=11 // pred_check
          %p378 = pneg %p196
        $region18: #{tpu_custom_call.1} parent=11 // pred_check_branch
          %380 = sbr.rel (%p378) target = $region20
        $region19: #{tpu_custom_call.1} parent=11 // pred_region
          %s382 = ssub.s32 256, 256
          %383 = vsyncadd [#allocation14], %s382
          %s384 = sshll.u32 [#allocation13], 4
          %s385 = int_to_ptr.vmem [resolvable:$true] %s384
          %390 = dma.hbm_to_vmem [thread:$0]  %s5, 256, %s385, [#allocation14], 64, 64, 4
        $region20: #{tpu_custom_call.1} parent=11 // pred_fallthru
          _
        // Predicated region
        $region21: #{tpu_custom_call.1} parent=11 // pred_check
          %p391 = pneg %p217
        $region22: #{tpu_custom_call.1} parent=11 // pred_check_branch
          %393 = sbr.rel (%p391) target = $region24
        $region23: #{tpu_custom_call.1} parent=11 // pred_region
          %s395 = ssub.s32 256, 256
          %396 = vsyncadd [#allocation14], %s395
          %s397 = sshll.u32 [#allocation15], 4
          %s398 = int_to_ptr.vmem [resolvable:$true] %s397
          %403 = dma.hbm_to_vmem [thread:$0]  %s6, 256, %s398, [#allocation14], 64, 64, 4
        $region24: #{tpu_custom_call.1} parent=11 // pred_fallthru
          _
        // Predicated region
        $region25: #{tpu_custom_call.1} parent=11 // pred_check
          %p404 = pneg %p238
        $region26: #{tpu_custom_call.1} parent=11 // pred_check_branch
          %406 = sbr.rel (%p404) target = $region28
        $region27: #{tpu_custom_call.1} parent=11 // pred_region
          %s408 = ssub.s32 256, 256
          %409 = vsyncadd [#allocation17], %s408
          %s410 = sshll.u32 [#allocation16], 4
          %s411 = int_to_ptr.vmem [resolvable:$true] %s410
          %416 = dma.hbm_to_vmem [thread:$0]  %s7, 256, %s411, [#allocation17], 64, 64, 4
        $region28: #{tpu_custom_call.1} parent=11 // pred_fallthru
          _
        // Predicated region
        $region29: #{tpu_custom_call.1} parent=11 // pred_check
          %p417 = pneg %p259
        $region30: #{tpu_custom_call.1} parent=11 // pred_check_branch
          %419 = sbr.rel (%p417) target = $region32
        $region31: #{tpu_custom_call.1} parent=11 // pred_region
          %s421 = ssub.s32 16, 16
          %422 = vsyncadd [#allocation17], %s421
          %s424 = sshll.u32 [#allocation18], 4
          %s425 = int_to_ptr.vmem [resolvable:$true] %s424
          %427 = dma.hbm_to_vmem [thread:$0]  %s8, 16, %s425, [#allocation17]
        $region32: #{tpu_custom_call.1} parent=11 // pred_fallthru
          _
        // Predicated region
        $region33: #{tpu_custom_call.1} parent=11 // pred_check
          %p428 = pneg %p280
        $region34: #{tpu_custom_call.1} parent=11 // pred_check_branch
          %430 = sbr.rel (%p428) target = $region36
        $region35: #{tpu_custom_call.1} parent=11 // pred_region
          %s432 = ssub.s32 16, 16
          %433 = vsyncadd [#allocation20], %s432
          %s435 = sshll.u32 [#allocation19], 4
          %s436 = int_to_ptr.vmem [resolvable:$true] %s435
          %438 = dma.hbm_to_vmem [thread:$0]  %s9, 16, %s436, [#allocation20]
        $region36: #{tpu_custom_call.1} parent=11 // pred_fallthru
          _
        // Predicated region
        $region37: #{tpu_custom_call.1} parent=11 // pred_check
          %p439 = pneg %p301
        $region38: #{tpu_custom_call.1} parent=11 // pred_check_branch
          %441 = sbr.rel (%p439) target = $region40
        $region39: #{tpu_custom_call.1} parent=11 // pred_region
          %s443 = ssub.s32 16, 16
          %444 = vsyncadd [#allocation20], %s443
          %s446 = sshll.u32 [#allocation21], 4
          %s447 = int_to_ptr.vmem [resolvable:$true] %s446
          %449 = dma.hbm_to_vmem [thread:$0]  %s10, 16, %s447, [#allocation20]
        $region40: #{tpu_custom_call.1} parent=11 // pred_fallthru
          _
        // Predicated region
        $region41: #{tpu_custom_call.1} parent=11 // pred_check
          %p450 = pneg %p322
        $region42: #{tpu_custom_call.1} parent=11 // pred_check_branch
          %452 = sbr.rel (%p450) target = $region44
        $region43: #{tpu_custom_call.1} parent=11 // pred_region
          %s454 = ssub.s32 16, 16
          %455 = vsyncadd [#allocation23], %s454
          %s457 = sshll.u32 [#allocation22], 4
          %s458 = int_to_ptr.vmem [resolvable:$true] %s457
          %460 = dma.hbm_to_vmem [thread:$0]  %s11, 16, %s458, [#allocation23]
        $region44: #{tpu_custom_call.1} parent=11 // pred_fallthru
          _
      $region12: #{tpu_custom_call.1} parent=5 // pred_fallthru
        _
      %p461 = scmp.lt.s32.totalorder %s34, 2
      // Predicated region
      $region45: #{tpu_custom_call.1} parent=5 // pred_check
        %p462 = pneg %p461
      $region46: #{tpu_custom_call.1} parent=5 // pred_check_branch
        %464 = sbr.rel (%p462) target = $region48
      $region47: #{tpu_custom_call.1} parent=5 // pred_region
        // Predicated region
        $region49: #{tpu_custom_call.1} parent=47 // pred_check
          %p465 = pneg %p68
        $region50: #{tpu_custom_call.1} parent=47 // pred_check_branch
          %467 = sbr.rel (%p465) target = $region52
        $region51: #{tpu_custom_call.1} parent=47 // pred_region
          %s468 = sand.u32 %s58, 1
          %s469 = scalar_lea.sflag [#allocation5], %s468
          %s470 = sand.u32 %s58, 1
          %s471 = smul.addr %s470, 4
          %s472 = scalar_lea.vmem [#allocation4], %s471
          %s474 = ssub.s32 64, 64
          %475 = vsyncadd %s469, %s474
          %s476 = sadd.s32 %s42, %s41
          %s477 = smul.addr %s476, 64
          %s478 = scalar_lea.hbm %s0, %s477
          %s480 = sshll.u32 %s472, 4
          %s481 = int_to_ptr.vmem [resolvable:$true] %s480
          %483 = dma.hbm_to_vmem [thread:$0]  %s478, 64, %s481, %s469
        $region52: #{tpu_custom_call.1} parent=47 // pred_fallthru
          _
        // Predicated region
        $region53: #{tpu_custom_call.1} parent=47 // pred_check
          %p484 = pneg %p94
        $region54: #{tpu_custom_call.1} parent=47 // pred_check_branch
          %486 = sbr.rel (%p484) target = $region56
        $region55: #{tpu_custom_call.1} parent=47 // pred_region
          %s487 = sand.u32 %s34, 1
          %s488 = scalar_lea.sflag [#allocation8], %s487
          %s489 = sand.u32 %s84, 1
          %s490 = smul.addr %s489, 4
          %s491 = scalar_lea.vmem [#allocation7], %s490
          %s493 = ssub.s32 64, 64
          %494 = vsyncadd %s488, %s493
          %s495 = smul.addr %s41, 64
          %s496 = scalar_lea.hbm %s1, %s495
          %s498 = sshll.u32 %s491, 4
          %s499 = int_to_ptr.vmem [resolvable:$true] %s498
          %501 = dma.hbm_to_vmem [thread:$0]  %s496, 64, %s499, %s488
        $region56: #{tpu_custom_call.1} parent=47 // pred_fallthru
          _
        // Predicated region
        $region57: #{tpu_custom_call.1} parent=47 // pred_check
          %p502 = pneg %p120
        $region58: #{tpu_custom_call.1} parent=47 // pred_check_branch
          %504 = sbr.rel (%p502) target = $region60
        $region59: #{tpu_custom_call.1} parent=47 // pred_region
          %s505 = sand.u32 %s34, 1
          %s506 = scalar_lea.sflag [#allocation8], %s505
          %s507 = sand.u32 %s110, 1
          %s508 = smul.addr %s507, 4
          %s509 = scalar_lea.vmem [#allocation9], %s508
          %s511 = ssub.s32 64, 64
          %512 = vsyncadd %s506, %s511
          %s513 = smul.addr %s41, 64
          %s514 = scalar_lea.hbm %s2, %s513
          %s516 = sshll.u32 %s509, 4
          %s517 = int_to_ptr.vmem [resolvable:$true] %s516
          %519 = dma.hbm_to_vmem [thread:$0]  %s514, 64, %s517, %s506
        $region60: #{tpu_custom_call.1} parent=47 // pred_fallthru
          _
        // Predicated region
        $region61: #{tpu_custom_call.1} parent=47 // pred_check
          %p520 = pneg %p148
        $region62: #{tpu_custom_call.1} parent=47 // pred_check_branch
          %522 = sbr.rel (%p520) target = $region64
        $region63: #{tpu_custom_call.1} parent=47 // pred_region
          %s523 = sand.u32 %s34, 1
          %s524 = scalar_lea.sflag [#allocation11], %s523
          %s525 = sand.u32 %s138, 1
          %s526 = smul.addr %s525, 2
          %s527 = scalar_lea.vmem [#allocation10], %s526
          %s529 = ssub.s32 32, 32
          %530 = vsyncadd %s524, %s529
          %s531 = sadd.s32 %s42, %s41
          %s532 = smul.addr %s531, 32
          %s533 = scalar_lea.hbm %s3, %s532
          %s535 = sshll.u32 %s527, 4
          %s536 = int_to_ptr.vmem [resolvable:$true] %s535
          %538 = dma.hbm_to_vmem [thread:$0]  %s533, 32, %s536, %s524
        $region64: #{tpu_custom_call.1} parent=47 // pred_fallthru
          _
      $region48: #{tpu_custom_call.1} parent=5 // pred_fallthru
        _
      %p539 = scmp.le.s32.totalorder 1, %s34
      %p540 = scmp.lt.s32.totalorder %s34, 3
      %p541 = pnand %p539, %p540
      %p542 = pneg %p541
      // Predicated region
      $region65: #{tpu_custom_call.1} parent=5 // pred_check
        _
      $region66: #{tpu_custom_call.1} parent=5 // pred_check_branch
        %544 = sbr.rel (%p541) target = $region68
      $region67: #{tpu_custom_call.1} parent=5 // pred_region
        %s545 = ssub.s32 %s34, 1
        %s546 = sand.u32 %s61, 1
        %s547 = scalar_lea.sflag [#allocation5], %s546
        %s548 = sand.u32 %s61, 1
        %s549 = smul.addr %s548, 4
        %s550 = scalar_lea.vmem [#allocation4], %s549
        // Predicated region
        $region69: #{tpu_custom_call.1} parent=67 // pred_check
          %p551 = pneg %p74
        $region70: #{tpu_custom_call.1} parent=67 // pred_check_branch
          %553 = sbr.rel (%p551) target = $region72
        $region71: #{tpu_custom_call.1} parent=67 // pred_region
          %554 = dma.done %s547, 64
        $region72: #{tpu_custom_call.1} parent=67 // pred_fallthru
          _
        %s555 = sand.u32 %s39, 1
        %s556 = scalar_lea.sflag [#allocation8], %s555
        %s557 = sand.u32 %s87, 1
        %s558 = smul.addr %s557, 4
        %s559 = scalar_lea.vmem [#allocation7], %s558
        // Predicated region
        $region73: #{tpu_custom_call.1} parent=67 // pred_check
          %p560 = pneg %p100
        $region74: #{tpu_custom_call.1} parent=67 // pred_check_branch
          %562 = sbr.rel (%p560) target = $region76
        $region75: #{tpu_custom_call.1} parent=67 // pred_region
          %563 = dma.done %s556, 64
        $region76: #{tpu_custom_call.1} parent=67 // pred_fallthru
          _
        %s564 = sand.u32 %s39, 1
        %s565 = scalar_lea.sflag [#allocation8], %s564
        %s566 = sand.u32 %s113, 1
        %s567 = smul.addr %s566, 4
        %s568 = scalar_lea.vmem [#allocation9], %s567
        // Predicated region
        $region77: #{tpu_custom_call.1} parent=67 // pred_check
          %p569 = pneg %p126
        $region78: #{tpu_custom_call.1} parent=67 // pred_check_branch
          %571 = sbr.rel (%p569) target = $region80
        $region79: #{tpu_custom_call.1} parent=67 // pred_region
          %572 = dma.done %s565, 64
        $region80: #{tpu_custom_call.1} parent=67 // pred_fallthru
          _
        %s573 = sand.u32 %s39, 1
        %s574 = scalar_lea.sflag [#allocation11], %s573
        %s575 = sand.u32 %s141, 1
        %s576 = smul.addr %s575, 2
        %s577 = scalar_lea.vmem [#allocation10], %s576
        // Predicated region
        $region81: #{tpu_custom_call.1} parent=67 // pred_check
          %p578 = pneg %p154
        $region82: #{tpu_custom_call.1} parent=67 // pred_check_branch
          %580 = sbr.rel (%p578) target = $region84
        $region83: #{tpu_custom_call.1} parent=67 // pred_region
          %581 = dma.done %s574, 32
        $region84: #{tpu_custom_call.1} parent=67 // pred_fallthru
          _
        // Predicated region
        $region85: #{tpu_custom_call.1} parent=67 // pred_check
          %p582 = pneg %p175
        $region86: #{tpu_custom_call.1} parent=67 // pred_check_branch
          %584 = sbr.rel (%p582) target = $region88
        $region87: #{tpu_custom_call.1} parent=67 // pred_region
          %585 = dma.done [#allocation11], 256
        $region88: #{tpu_custom_call.1} parent=67 // pred_fallthru
          _
        // Predicated region
        $region89: #{tpu_custom_call.1} parent=67 // pred_check
          %p586 = pneg %p196
        $region90: #{tpu_custom_call.1} parent=67 // pred_check_branch
          %588 = sbr.rel (%p586) target = $region92
        $region91: #{tpu_custom_call.1} parent=67 // pred_region
          %589 = dma.done [#allocation14], 256
        $region92: #{tpu_custom_call.1} parent=67 // pred_fallthru
          _
        // Predicated region
        $region93: #{tpu_custom_call.1} parent=67 // pred_check
          %p590 = pneg %p217
        $region94: #{tpu_custom_call.1} parent=67 // pred_check_branch
          %592 = sbr.rel (%p590) target = $region96
        $region95: #{tpu_custom_call.1} parent=67 // pred_region
          %593 = dma.done [#allocation14], 256
        $region96: #{tpu_custom_call.1} parent=67 // pred_fallthru
          _
        // Predicated region
        $region97: #{tpu_custom_call.1} parent=67 // pred_check
          %p594 = pneg %p238
        $region98: #{tpu_custom_call.1} parent=67 // pred_check_branch
          %596 = sbr.rel (%p594) target = $region100
        $region99: #{tpu_custom_call.1} parent=67 // pred_region
          %597 = dma.done [#allocation17], 256
        $region100: #{tpu_custom_call.1} parent=67 // pred_fallthru
          _
        // Predicated region
        $region101: #{tpu_custom_call.1} parent=67 // pred_check
          %p598 = pneg %p259
        $region102: #{tpu_custom_call.1} parent=67 // pred_check_branch
          %600 = sbr.rel (%p598) target = $region104
        $region103: #{tpu_custom_call.1} parent=67 // pred_region
          %601 = dma.done [#allocation17], 16
        $region104: #{tpu_custom_call.1} parent=67 // pred_fallthru
          _
        // Predicated region
        $region105: #{tpu_custom_call.1} parent=67 // pred_check
          %p602 = pneg %p280
        $region106: #{tpu_custom_call.1} parent=67 // pred_check_branch
          %604 = sbr.rel (%p602) target = $region108
        $region107: #{tpu_custom_call.1} parent=67 // pred_region
          %605 = dma.done [#allocation20], 16
        $region108: #{tpu_custom_call.1} parent=67 // pred_fallthru
          _
        // Predicated region
        $region109: #{tpu_custom_call.1} parent=67 // pred_check
          %p606 = pneg %p301
        $region110: #{tpu_custom_call.1} parent=67 // pred_check_branch
          %608 = sbr.rel (%p606) target = $region112
        $region111: #{tpu_custom_call.1} parent=67 // pred_region
          %609 = dma.done [#allocation20], 16
        $region112: #{tpu_custom_call.1} parent=67 // pred_fallthru
          _
        // Predicated region
        $region113: #{tpu_custom_call.1} parent=67 // pred_check
          %p610 = pneg %p322
        $region114: #{tpu_custom_call.1} parent=67 // pred_check_branch
          %612 = sbr.rel (%p610) target = $region116
        $region115: #{tpu_custom_call.1} parent=67 // pred_region
          %613 = dma.done [#allocation23], 16
        $region116: #{tpu_custom_call.1} parent=67 // pred_fallthru
          _
        %s614 = sand.u32 %s61, 1
        %s615 = scalar_lea.sflag [#allocation5], %s614
        %s616 = sand.u32 %s61, 1
        %s617 = smul.addr %s616, 4
        %s618 = scalar_lea.vmem [#allocation4], %s617
        %p619 = pneg %p74
        %p620 = pneg %p71
        %s621 = sand.u32 %s39, 1
        %s622 = scalar_lea.sflag [#allocation8], %s621
        %s623 = sand.u32 %s87, 1
        %s624 = smul.addr %s623, 4
        %s625 = scalar_lea.vmem [#allocation7], %s624
        %p626 = pneg %p100
        %p627 = pneg %p97
        %s628 = sand.u32 %s39, 1
        %s629 = scalar_lea.sflag [#allocation8], %s628
        %s630 = sand.u32 %s113, 1
        %s631 = smul.addr %s630, 4
        %s632 = scalar_lea.vmem [#allocation9], %s631
        %p633 = pneg %p126
        %p634 = pneg %p123
        %s635 = sand.u32 %s39, 1
        %s636 = scalar_lea.sflag [#allocation11], %s635
        %s637 = sand.u32 %s141, 1
        %s638 = smul.addr %s637, 2
        %s639 = scalar_lea.vmem [#allocation10], %s638
        %p640 = pneg %p154
        %p641 = pneg %p151
        %p642 = pneg %p175
        %p643 = pneg %p172
        %p644 = pneg %p196
        %p645 = pneg %p193
        %p646 = pneg %p217
        %p647 = pneg %p214
        %p648 = pneg %p238
        %p649 = pneg %p235
        %p650 = pneg %p259
        %p651 = pneg %p256
        %p652 = pneg %p280
        %p653 = pneg %p277
        %p654 = pneg %p301
        %p655 = pneg %p298
        %p656 = pneg %p322
        %p657 = pneg %p319
        %p658 = pneg %p350
        %p659 = pneg %p347
        %s660 = sand.u32 %s337, 1
        %s661 = scalar_lea.sflag [#allocation6], %s660
        %s662 = sand.u32 %s337, 1
        %s663 = smul.addr %s662, 8
        %s664 = scalar_lea.vmem [#allocation24], %s663
        %p668 = scmp.eq.s32.totalorder %s44, 0
        // Predicated region
        $region117: #{tpu_custom_call.1} parent=67 // pred_check
          %p669 = pneg %p668
        $region118: #{tpu_custom_call.1} parent=67 // pred_check_branch
          %671 = sbr.rel (%p669) target = $region120
        $region119: #{tpu_custom_call.1} parent=67 // pred_region
          %v672 = vld [vmem:[%s559] sm:$0xf]
          %v673 = vld [vmem:[#allocation13] sm:$0xf]
          %v674 = vld [vmem:[#allocation13 + $0x4] sm:$0xf]
          %v675 = vld [vmem:[#allocation13 + $0x8] sm:$0xf]
          %v676 = vld [vmem:[#allocation13 + $0xc] sm:$0xf]
          %v677 = vld [vmem:[#allocation19] sm:$0x1]
          %v679 = vlaneseq
          %v680 = vshrl.u32 %v679, 7
          %v681 = vsub.s32 0, %v680
          %v682 = vrot.slane %v677, %v681
          %v688 = vunpack.c.l.b16 %v673
          %v689 = vunpack.c.l.b16 %v674
          %v690 = vunpack.c.l.b16 %v675
          %v691 = vunpack.c.l.b16 %v676
          %v692 = vpack.c.b16 %v689, %v688
          %v693 = vpack.c.b16 %v691, %v690
          %vm696 = vcmask 261120
          %v698 = vsel %vm696, %v672, 0
          %700 = vmatprep.subr.bf16.mxu0 0
          %701 = vmatpush1.bf16.msra.mxu0 %v692
          %702 = vmatprep.subr.bf16.mxu0 0
          %703 = vmatpush1.bf16.msra.mxu0 %v693
          %704 = vmatprep.subr.bf16.mxu0 0
          %705 = vmatpush1.bf16.msra.mxu0 0
          %706 = vmatprep.subr.bf16.mxu0 0
          %707 = vmatpush1.bf16.msra.mxu0 0
          %708 = vmatprep.subr.bf16.mxu0 0
          %709 = vmatpush1.bf16.msra.mxu0 0
          %710 = vmatprep.subr.bf16.mxu0 0
          %711 = vmatpush1.bf16.msra.mxu0 0
          %712 = vmatprep.subr.bf16.mxu0 0
          %713 = vmatpush1.bf16.msra.mxu0 0
          %714 = vmatprep.subr.bf16.mxu0 0
          %715 = vmatpush1.bf16.msra.mxu0 0
          %716 = vmatprep.subr.bf16.mxu0 0
          %717 = vmatpush1.bf16.msra.mxu0 0
          %718 = vmatprep.subr.bf16.mxu0 0
          %719 = vmatpush1.bf16.msra.mxu0 0
          %720 = vmatprep.subr.bf16.mxu0 0
          %721 = vmatpush1.bf16.msra.mxu0 0
          %722 = vmatprep.subr.bf16.mxu0 0
          %723 = vmatpush1.bf16.msra.mxu0 0
          %724 = vmatprep.subr.bf16.mxu0 0
          %725 = vmatpush1.bf16.msra.mxu0 0
          %726 = vmatprep.subr.bf16.mxu0 0
          %727 = vmatpush1.bf16.msra.mxu0 0
          %728 = vmatprep.subr.bf16.mxu0 0
          %729 = vmatpush1.bf16.msra.mxu0 0
          %730 = vmatprep.subr.bf16.mxu0 0
          %731 = vmatpush1.bf16.msra.mxu0 0
          %732 = vmatprep.mubr.bf16.mxu0 0
          %733 = vmatmul.mubr.bf16.gmra.mrb[0].mxu0 %v698
          %v734 = vpop.f32.mrb[0].mxu0
          %v735 = vadd.f32 %v682, %v734
          %v736 = vpop.f32.mrb[0].mxu0
          %v737 = vpop.f32.mrb[0].mxu0
          %v738 = vpop.f32.mrb[0].mxu0
          %739 = vdwg.mxu0
          %v740 = vld [vmem:[%s568] sm:$0xf]
          %v741 = vld [vmem:[#allocation15] sm:$0xf]
          %v742 = vld [vmem:[#allocation15 + $0x4] sm:$0xf]
          %v743 = vld [vmem:[#allocation15 + $0x8] sm:$0xf]
          %v744 = vld [vmem:[#allocation15 + $0xc] sm:$0xf]
          %v745 = vld [vmem:[#allocation21] sm:$0x1]
          %v747 = vlaneseq
          %v748 = vshrl.u32 %v747, 7
          %v749 = vsub.s32 0, %v748
          %v750 = vrot.slane %v745, %v749
          %v756 = vunpack.c.l.b16 %v741
          %v757 = vunpack.c.l.b16 %v742
          %v758 = vunpack.c.l.b16 %v743
          %v759 = vunpack.c.l.b16 %v744
          %v760 = vpack.c.b16 %v757, %v756
          %v761 = vpack.c.b16 %v759, %v758
          %v765 = vsel %vm696, %v740, 0
          %767 = vmatprep.subr.bf16.mxu0 0
          %768 = vmatpush1.bf16.msra.mxu0 %v760
          %769 = vmatprep.subr.bf16.mxu0 0
          %770 = vmatpush1.bf16.msra.mxu0 %v761
          %771 = vmatprep.subr.bf16.mxu0 0
          %772 = vmatpush1.bf16.msra.mxu0 0
          %773 = vmatprep.subr.bf16.mxu0 0
          %774 = vmatpush1.bf16.msra.mxu0 0
          %775 = vmatprep.subr.bf16.mxu0 0
          %776 = vmatpush1.bf16.msra.mxu0 0
          %777 = vmatprep.subr.bf16.mxu0 0
          %778 = vmatpush1.bf16.msra.mxu0 0
          %779 = vmatprep.subr.bf16.mxu0 0
          %780 = vmatpush1.bf16.msra.mxu0 0
          %781 = vmatprep.subr.bf16.mxu0 0
          %782 = vmatpush1.bf16.msra.mxu0 0
          %783 = vmatprep.subr.bf16.mxu0 0
          %784 = vmatpush1.bf16.msra.mxu0 0
          %785 = vmatprep.subr.bf16.mxu0 0
          %786 = vmatpush1.bf16.msra.mxu0 0
          %787 = vmatprep.subr.bf16.mxu0 0
          %788 = vmatpush1.bf16.msra.mxu0 0
          %789 = vmatprep.subr.bf16.mxu0 0
          %790 = vmatpush1.bf16.msra.mxu0 0
          %791 = vmatprep.subr.bf16.mxu0 0
          %792 = vmatpush1.bf16.msra.mxu0 0
          %793 = vmatprep.subr.bf16.mxu0 0
          %794 = vmatpush1.bf16.msra.mxu0 0
          %795 = vmatprep.subr.bf16.mxu0 0
          %796 = vmatpush1.bf16.msra.mxu0 0
          %797 = vmatprep.subr.bf16.mxu0 0
          %798 = vmatpush1.bf16.msra.mxu0 0
          %799 = vmatprep.mubr.bf16.mxu0 0
          %800 = vmatmul.mubr.bf16.gmra.mrb[0].mxu0 %v765
          %v801 = vpop.f32.mrb[0].mxu0
          %v802 = vadd.f32 %v750, %v801
          %v803 = vpop.f32.mrb[0].mxu0
          %v804 = vpop.f32.mrb[0].mxu0
          %v805 = vpop.f32.mrb[0].mxu0
          %806 = vdwg.mxu0
          %v807 = vpack.c.bf16 %v735, %v735
          %vm808 = vcmask 257024
          %809 = vst.msk [vmem:[#allocation2] sm:$0xf] %vm808, %v807
          %v810 = vpack.c.bf16 %v802, %v802
          %811 = vst.msk [vmem:[#allocation3] sm:$0xf] %vm808, %v810
        $region120: #{tpu_custom_call.1} parent=67 // pred_fallthru
          _
        %v812 = vld [vmem:[%s550] sm:$0xf]
        %v813 = vld [vmem:[#allocation12] sm:$0xf]
        %v814 = vld [vmem:[#allocation12 + $0x4] sm:$0xf]
        %v815 = vld [vmem:[#allocation12 + $0x8] sm:$0xf]
        %v816 = vld [vmem:[#allocation12 + $0xc] sm:$0xf]
        %v817 = vld [vmem:[#allocation18] sm:$0x1]
        %v819 = vlaneseq
        %v820 = vshrl.u32 %v819, 7
        %v821 = vsub.s32 0, %v820
        %v822 = vrot.slane %v817, %v821
        %v828 = vunpack.c.l.b16 %v813
        %v829 = vunpack.c.l.b16 %v814
        %v830 = vunpack.c.l.b16 %v815
        %v831 = vunpack.c.l.b16 %v816
        %v832 = vpack.c.b16 %v829, %v828
        %v833 = vpack.c.b16 %v831, %v830
        %vm836 = vcmask 261120
        %v838 = vsel %vm836, %v812, 0
        %840 = vmatprep.subr.bf16.mxu0 0
        %841 = vmatpush1.bf16.msra.mxu0 %v832
        %842 = vmatprep.subr.bf16.mxu0 0
        %843 = vmatpush1.bf16.msra.mxu0 %v833
        %844 = vmatprep.subr.bf16.mxu0 0
        %845 = vmatpush1.bf16.msra.mxu0 0
        %846 = vmatprep.subr.bf16.mxu0 0
        %847 = vmatpush1.bf16.msra.mxu0 0
        %848 = vmatprep.subr.bf16.mxu0 0
        %849 = vmatpush1.bf16.msra.mxu0 0
        %850 = vmatprep.subr.bf16.mxu0 0
        %851 = vmatpush1.bf16.msra.mxu0 0
        %852 = vmatprep.subr.bf16.mxu0 0
        %853 = vmatpush1.bf16.msra.mxu0 0
        %854 = vmatprep.subr.bf16.mxu0 0
        %855 = vmatpush1.bf16.msra.mxu0 0
        %856 = vmatprep.subr.bf16.mxu0 0
        %857 = vmatpush1.bf16.msra.mxu0 0
        %858 = vmatprep.subr.bf16.mxu0 0
        %859 = vmatpush1.bf16.msra.mxu0 0
        %860 = vmatprep.subr.bf16.mxu0 0
        %861 = vmatpush1.bf16.msra.mxu0 0
        %862 = vmatprep.subr.bf16.mxu0 0
        %863 = vmatpush1.bf16.msra.mxu0 0
        %864 = vmatprep.subr.bf16.mxu0 0
        %865 = vmatpush1.bf16.msra.mxu0 0
        %866 = vmatprep.subr.bf16.mxu0 0
        %867 = vmatpush1.bf16.msra.mxu0 0
        %868 = vmatprep.subr.bf16.mxu0 0
        %869 = vmatpush1.bf16.msra.mxu0 0
        %870 = vmatprep.subr.bf16.mxu0 0
        %871 = vmatpush1.bf16.msra.mxu0 0
        %872 = vmatprep.mubr.bf16.mxu0 0
        %873 = vmatmul.mubr.bf16.gmra.mrb[0].mxu0 %v838
        %v874 = vpop.f32.mrb[0].mxu0
        %v875 = vadd.f32 %v822, %v874
        %v876 = vpop.f32.mrb[0].mxu0
        %v877 = vpop.f32.mrb[0].mxu0
        %v878 = vpop.f32.mrb[0].mxu0
        %879 = vdwg.mxu0
        %v880 = vpack.c.bf16 %v875, %v875
        %v881 = vld [vmem:[#allocation2] sm:$0xf]
        %v882 = vld [vmem:[#allocation3] sm:$0xf]
        %v883 = vld [vmem:[%s577] sm:$0x3]
        %vm884 = vcmask 64512
        %v886 = vsel %vm884, %v880, 0
        %v889 = vsel %vm884, %v881, 0
        %891 = vmatprep.subr.bf16.mxu0 0
        %892 = vmatpush1.bf16.xpose.msra.mxu0 %v889
        %893 = vmatprep.subr.bf16.mxu0 0
        %894 = vmatpush1.bf16.xpose.msra.mxu0 0
        %895 = vmatprep.subr.bf16.mxu0 0
        %896 = vmatpush1.bf16.xpose.msra.mxu0 0
        %897 = vmatprep.subr.bf16.mxu0 0
        %898 = vmatpush1.bf16.xpose.msra.mxu0 0
        %899 = vmatprep.subr.bf16.mxu0 0
        %900 = vmatpush1.bf16.xpose.msra.mxu0 0
        %901 = vmatprep.subr.bf16.mxu0 0
        %902 = vmatpush1.bf16.xpose.msra.mxu0 0
        %903 = vmatprep.subr.bf16.mxu0 0
        %904 = vmatpush1.bf16.xpose.msra.mxu0 0
        %905 = vmatprep.subr.bf16.mxu0 0
        %906 = vmatpush1.bf16.xpose.msra.mxu0 0
        %907 = vmatprep.subr.bf16.mxu0 0
        %908 = vmatpush1.bf16.xpose.msra.mxu0 0
        %909 = vmatprep.subr.bf16.mxu0 0
        %910 = vmatpush1.bf16.xpose.msra.mxu0 0
        %911 = vmatprep.subr.bf16.mxu0 0
        %912 = vmatpush1.bf16.xpose.msra.mxu0 0
        %913 = vmatprep.subr.bf16.mxu0 0
        %914 = vmatpush1.bf16.xpose.msra.mxu0 0
        %915 = vmatprep.subr.bf16.mxu0 0
        %916 = vmatpush1.bf16.xpose.msra.mxu0 0
        %917 = vmatprep.subr.bf16.mxu0 0
        %918 = vmatpush1.bf16.xpose.msra.mxu0 0
        %919 = vmatprep.subr.bf16.mxu0 0
        %920 = vmatpush1.bf16.xpose.msra.mxu0 0
        %921 = vmatprep.subr.bf16.mxu0 0
        %922 = vmatpush1.bf16.xpose.msra.mxu0 0
        %923 = vmatprep.mubr.bf16.mxu0 0
        %924 = vmatmul.mubr.bf16.gmra.mrb[0].mxu0 %v886
        %v925 = vpop.f32.mrb[0].mxu0
        %v926 = vadd.f32 0.0, %v925
        %v927 = vpop.f32.mrb[0].mxu0
        %v928 = vpop.f32.mrb[0].mxu0
        %v929 = vpop.f32.mrb[0].mxu0
        %930 = vdwg.mxu0
        %vm931 = vnez %v883
        %v932 = vsel %vm931, 16843009, 0
        %v933 = vunpack.c.0.s8 %v932
        %vm934 = vcmp.ne.s32.totalorder %v933, 0
        %v935 = vsel %vm934, -10000.0, %v926
        %v936 = vsel %vm884, %v935, -inf
        %937 = vmax.xlane.f32.xlu0 %v936
        %v938 = vpop.xlane.xlu0 %937
        %v939 = vsub.f32 %v935, %v938
        %v940 = vmul.f32 %v939, 1.442695
        %v941 = vpow.pop %v940
        %v942 = vsel %vm884, %v941, 0.0
        %943 = vadd.xlane.f32.xlu0 %v942
        %v944 = vpop.xlane.xlu0 %943
        %v945 = vrcp.pop %v944
        %v946 = vmul.f32 %v941, %v945
        %v947 = vpack.c.bf16 %v946, %v946
        %v949 = vsel %vm884, %v947, 0
        %vm951 = vcmask 1043456
        %v953 = vsel %vm951, %v882, 0
        %955 = vmatprep.subr.bf16.mxu0 0
        %956 = vmatpush1.bf16.msra.mxu0 %v953
        %957 = vmatprep.subr.bf16.mxu0 0
        %958 = vmatpush1.bf16.msra.mxu0 0
        %959 = vmatprep.subr.bf16.mxu0 0
        %960 = vmatpush1.bf16.msra.mxu0 0
        %961 = vmatprep.subr.bf16.mxu0 0
        %962 = vmatpush1.bf16.msra.mxu0 0
        %963 = vmatprep.subr.bf16.mxu0 0
        %964 = vmatpush1.bf16.msra.mxu0 0
        %965 = vmatprep.subr.bf16.mxu0 0
        %966 = vmatpush1.bf16.msra.mxu0 0
        %967 = vmatprep.subr.bf16.mxu0 0
        %968 = vmatpush1.bf16.msra.mxu0 0
        %969 = vmatprep.subr.bf16.mxu0 0
        %970 = vmatpush1.bf16.msra.mxu0 0
        %971 = vmatprep.subr.bf16.mxu0 0
        %972 = vmatpush1.bf16.msra.mxu0 0
        %973 = vmatprep.subr.bf16.mxu0 0
        %974 = vmatpush1.bf16.msra.mxu0 0
        %975 = vmatprep.subr.bf16.mxu0 0
        %976 = vmatpush1.bf16.msra.mxu0 0
        %977 = vmatprep.subr.bf16.mxu0 0
        %978 = vmatpush1.bf16.msra.mxu0 0
        %979 = vmatprep.subr.bf16.mxu0 0
        %980 = vmatpush1.bf16.msra.mxu0 0
        %981 = vmatprep.subr.bf16.mxu0 0
        %982 = vmatpush1.bf16.msra.mxu0 0
        %983 = vmatprep.subr.bf16.mxu0 0
        %984 = vmatpush1.bf16.msra.mxu0 0
        %985 = vmatprep.subr.bf16.mxu0 0
        %986 = vmatpush1.bf16.msra.mxu0 0
        %987 = vmatprep.mubr.bf16.mxu0 0
        %988 = vmatmul.mubr.bf16.gmra.mrb[0].mxu0 %v949
        %v989 = vpop.f32.mrb[0].mxu0
        %v990 = vadd.f32 0.0, %v989
        %v991 = vpop.f32.mrb[0].mxu0
        %v992 = vpop.f32.mrb[0].mxu0
        %v993 = vpop.f32.mrb[0].mxu0
        %994 = vdwg.mxu0
        %996 = vrot.lane.b32.xlu0 %v880, 120
        %v997 = vpop.permute.xlu0 %996
        %v999 = vunpack.c.l.b16 %v881
        %v1000 = vpack.c.b16 %v999, %v999
        %1001 = vrot.lane.b32.xlu0 %v1000, 120
        %v1002 = vpop.permute.xlu0 %1001
        %v1004 = vsel %vm884, %v997, 0
        %v1007 = vsel %vm884, %v1002, 0
        %1009 = vmatprep.subr.bf16.mxu0 0
        %1010 = vmatpush1.bf16.xpose.msra.mxu0 %v1007
        %1011 = vmatprep.subr.bf16.mxu0 0
        %1012 = vmatpush1.bf16.xpose.msra.mxu0 0
        %1013 = vmatprep.subr.bf16.mxu0 0
        %1014 = vmatpush1.bf16.xpose.msra.mxu0 0
        %1015 = vmatprep.subr.bf16.mxu0 0
        %1016 = vmatpush1.bf16.xpose.msra.mxu0 0
        %1017 = vmatprep.subr.bf16.mxu0 0
        %1018 = vmatpush1.bf16.xpose.msra.mxu0 0
        %1019 = vmatprep.subr.bf16.mxu0 0
        %1020 = vmatpush1.bf16.xpose.msra.mxu0 0
        %1021 = vmatprep.subr.bf16.mxu0 0
        %1022 = vmatpush1.bf16.xpose.msra.mxu0 0
        %1023 = vmatprep.subr.bf16.mxu0 0
        %1024 = vmatpush1.bf16.xpose.msra.mxu0 0
        %1025 = vmatprep.subr.bf16.mxu0 0
        %1026 = vmatpush1.bf16.xpose.msra.mxu0 0
        %1027 = vmatprep.subr.bf16.mxu0 0
        %1028 = vmatpush1.bf16.xpose.msra.mxu0 0
        %1029 = vmatprep.subr.bf16.mxu0 0
        %1030 = vmatpush1.bf16.xpose.msra.mxu0 0
        %1031 = vmatprep.subr.bf16.mxu0 0
        %1032 = vmatpush1.bf16.xpose.msra.mxu0 0
        %1033 = vmatprep.subr.bf16.mxu0 0
        %1034 = vmatpush1.bf16.xpose.msra.mxu0 0
        %1035 = vmatprep.subr.bf16.mxu0 0
        %1036 = vmatpush1.bf16.xpose.msra.mxu0 0
        %1037 = vmatprep.subr.bf16.mxu0 0
        %1038 = vmatpush1.bf16.xpose.msra.mxu0 0
        %1039 = vmatprep.subr.bf16.mxu0 0
        %1040 = vmatpush1.bf16.xpose.msra.mxu0 0
        %1041 = vmatprep.mubr.bf16.mxu0 0
        %1042 = vmatmul.mubr.bf16.gmra.mrb[0].mxu0 %v1004
        %v1043 = vpop.f32.mrb[0].mxu0
        %v1044 = vadd.f32 0.0, %v1043
        %v1045 = vpop.f32.mrb[0].mxu0
        %v1046 = vpop.f32.mrb[0].mxu0
        %v1047 = vpop.f32.mrb[0].mxu0
        %1048 = vdwg.mxu0
        %v1049 = vsel %vm934, -10000.0, %v1044
        %v1050 = vsel %vm884, %v1049, -inf
        %1051 = vmax.xlane.f32.xlu0 %v1050
        %v1052 = vpop.xlane.xlu0 %1051
        %v1053 = vsub.f32 %v1049, %v1052
        %v1054 = vmul.f32 %v1053, 1.442695
        %v1055 = vpow.pop %v1054
        %v1056 = vsel %vm884, %v1055, 0.0
        %1057 = vadd.xlane.f32.xlu0 %v1056
        %v1058 = vpop.xlane.xlu0 %1057
        %v1059 = vrcp.pop %v1058
        %v1060 = vmul.f32 %v1055, %v1059
        %v1061 = vpack.c.bf16 %v1060, %v1060
        %v1063 = vunpack.c.l.b16 %v882
        %v1064 = vpack.c.b16 %v1063, %v1063
        %1065 = vrot.lane.b32.xlu0 %v1064, 120
        %v1066 = vpop.permute.xlu0 %1065
        %v1068 = vsel %vm884, %v1061, 0
        %v1071 = vsel %vm951, %v1066, 0
        %1073 = vmatprep.subr.bf16.mxu0 0
        %1074 = vmatpush1.bf16.msra.mxu0 %v1071
        %1075 = vmatprep.subr.bf16.mxu0 0
        %1076 = vmatpush1.bf16.msra.mxu0 0
        %1077 = vmatprep.subr.bf16.mxu0 0
        %1078 = vmatpush1.bf16.msra.mxu0 0
        %1079 = vmatprep.subr.bf16.mxu0 0
        %1080 = vmatpush1.bf16.msra.mxu0 0
        %1081 = vmatprep.subr.bf16.mxu0 0
        %1082 = vmatpush1.bf16.msra.mxu0 0
        %1083 = vmatprep.subr.bf16.mxu0 0
        %1084 = vmatpush1.bf16.msra.mxu0 0
        %1085 = vmatprep.subr.bf16.mxu0 0
        %1086 = vmatpush1.bf16.msra.mxu0 0
        %1087 = vmatprep.subr.bf16.mxu0 0
        %1088 = vmatpush1.bf16.msra.mxu0 0
        %1089 = vmatprep.subr.bf16.mxu0 0
        %1090 = vmatpush1.bf16.msra.mxu0 0
        %1091 = vmatprep.subr.bf16.mxu0 0
        %1092 = vmatpush1.bf16.msra.mxu0 0
        %1093 = vmatprep.subr.bf16.mxu0 0
        %1094 = vmatpush1.bf16.msra.mxu0 0
        %1095 = vmatprep.subr.bf16.mxu0 0
        %1096 = vmatpush1.bf16.msra.mxu0 0
        %1097 = vmatprep.subr.bf16.mxu0 0
        %1098 = vmatpush1.bf16.msra.mxu0 0
        %1099 = vmatprep.subr.bf16.mxu0 0
        %1100 = vmatpush1.bf16.msra.mxu0 0
        %1101 = vmatprep.subr.bf16.mxu0 0
        %1102 = vmatpush1.bf16.msra.mxu0 0
        %1103 = vmatprep.subr.bf16.mxu0 0
        %1104 = vmatpush1.bf16.msra.mxu0 0
        %1105 = vmatprep.mubr.bf16.mxu0 0
        %1106 = vmatmul.mubr.bf16.gmra.mrb[0].mxu0 %v1068
        %v1107 = vpop.f32.mrb[0].mxu0
        %v1108 = vadd.f32 0.0, %v1107
        %v1109 = vpop.f32.mrb[0].mxu0
        %v1110 = vpop.f32.mrb[0].mxu0
        %v1111 = vpop.f32.mrb[0].mxu0
        %1112 = vdwg.mxu0
        %1113 = vrot.lane.b32.xlu0 %v880, 112
        %v1114 = vpop.permute.xlu0 %1113
        %1115 = vrot.lane.b32.xlu0 %v1000, 112
        %v1116 = vpop.permute.xlu0 %1115
        %v1118 = vsel %vm884, %v1114, 0
        %v1121 = vsel %vm884, %v1116, 0
        %1123 = vmatprep.subr.bf16.mxu0 0
        %1124 = vmatpush1.bf16.xpose.msra.mxu0 %v1121
        %1125 = vmatprep.subr.bf16.mxu0 0
        %1126 = vmatpush1.bf16.xpose.msra.mxu0 0
        %1127 = vmatprep.subr.bf16.mxu0 0
        %1128 = vmatpush1.bf16.xpose.msra.mxu0 0
        %1129 = vmatprep.subr.bf16.mxu0 0
        %1130 = vmatpush1.bf16.xpose.msra.mxu0 0
        %1131 = vmatprep.subr.bf16.mxu0 0
        %1132 = vmatpush1.bf16.xpose.msra.mxu0 0
        %1133 = vmatprep.subr.bf16.mxu0 0
        %1134 = vmatpush1.bf16.xpose.msra.mxu0 0
        %1135 = vmatprep.subr.bf16.mxu0 0
        %1136 = vmatpush1.bf16.xpose.msra.mxu0 0
        %1137 = vmatprep.subr.bf16.mxu0 0
        %1138 = vmatpush1.bf16.xpose.msra.mxu0 0
        %1139 = vmatprep.subr.bf16.mxu0 0
        %1140 = vmatpush1.bf16.xpose.msra.mxu0 0
        %1141 = vmatprep.subr.bf16.mxu0 0
        %1142 = vmatpush1.bf16.xpose.msra.mxu0 0
        %1143 = vmatprep.subr.bf16.mxu0 0
        %1144 = vmatpush1.bf16.xpose.msra.mxu0 0
        %1145 = vmatprep.subr.bf16.mxu0 0
        %1146 = vmatpush1.bf16.xpose.msra.mxu0 0
        %1147 = vmatprep.subr.bf16.mxu0 0
        %1148 = vmatpush1.bf16.xpose.msra.mxu0 0
        %1149 = vmatprep.subr.bf16.mxu0 0
        %1150 = vmatpush1.bf16.xpose.msra.mxu0 0
        %1151 = vmatprep.subr.bf16.mxu0 0
        %1152 = vmatpush1.bf16.xpose.msra.mxu0 0
        %1153 = vmatprep.subr.bf16.mxu0 0
        %1154 = vmatpush1.bf16.xpose.msra.mxu0 0
        %1155 = vmatprep.mubr.bf16.mxu0 0
        %1156 = vmatmul.mubr.bf16.gmra.mrb[0].mxu0 %v1118
        %v1157 = vpop.f32.mrb[0].mxu0
        %v1158 = vadd.f32 0.0, %v1157
        %v1159 = vpop.f32.mrb[0].mxu0
        %v1160 = vpop.f32.mrb[0].mxu0
        %v1161 = vpop.f32.mrb[0].mxu0
        %1162 = vdwg.mxu0
        %v1163 = vsel %vm934, -10000.0, %v1158
        %v1164 = vsel %vm884, %v1163, -inf
        %1165 = vmax.xlane.f32.xlu0 %v1164
        %v1166 = vpop.xlane.xlu0 %1165
        %v1167 = vsub.f32 %v1163, %v1166
        %v1168 = vmul.f32 %v1167, 1.442695
        %v1169 = vpow.pop %v1168
        %v1170 = vsel %vm884, %v1169, 0.0
        %1171 = vadd.xlane.f32.xlu0 %v1170
        %v1172 = vpop.xlane.xlu0 %1171
        %v1173 = vrcp.pop %v1172
        %v1174 = vmul.f32 %v1169, %v1173
        %v1175 = vpack.c.bf16 %v1174, %v1174
        %1176 = vrot.lane.b32.xlu0 %v1064, 112
        %v1177 = vpop.permute.xlu0 %1176
        %v1179 = vsel %vm884, %v1175, 0
        %v1182 = vsel %vm951, %v1177, 0
        %1184 = vmatprep.subr.bf16.mxu0 0
        %1185 = vmatpush1.bf16.msra.mxu0 %v1182
        %1186 = vmatprep.subr.bf16.mxu0 0
        %1187 = vmatpush1.bf16.msra.mxu0 0
        %1188 = vmatprep.subr.bf16.mxu0 0
        %1189 = vmatpush1.bf16.msra.mxu0 0
        %1190 = vmatprep.subr.bf16.mxu0 0
        %1191 = vmatpush1.bf16.msra.mxu0 0
        %1192 = vmatprep.subr.bf16.mxu0 0
        %1193 = vmatpush1.bf16.msra.mxu0 0
        %1194 = vmatprep.subr.bf16.mxu0 0
        %1195 = vmatpush1.bf16.msra.mxu0 0
        %1196 = vmatprep.subr.bf16.mxu0 0
        %1197 = vmatpush1.bf16.msra.mxu0 0
        %1198 = vmatprep.subr.bf16.mxu0 0
        %1199 = vmatpush1.bf16.msra.mxu0 0
        %1200 = vmatprep.subr.bf16.mxu0 0
        %1201 = vmatpush1.bf16.msra.mxu0 0
        %1202 = vmatprep.subr.bf16.mxu0 0
        %1203 = vmatpush1.bf16.msra.mxu0 0
        %1204 = vmatprep.subr.bf16.mxu0 0
        %1205 = vmatpush1.bf16.msra.mxu0 0
        %1206 = vmatprep.subr.bf16.mxu0 0
        %1207 = vmatpush1.bf16.msra.mxu0 0
        %1208 = vmatprep.subr.bf16.mxu0 0
        %1209 = vmatpush1.bf16.msra.mxu0 0
        %1210 = vmatprep.subr.bf16.mxu0 0
        %1211 = vmatpush1.bf16.msra.mxu0 0
        %1212 = vmatprep.subr.bf16.mxu0 0
        %1213 = vmatpush1.bf16.msra.mxu0 0
        %1214 = vmatprep.subr.bf16.mxu0 0
        %1215 = vmatpush1.bf16.msra.mxu0 0
        %1216 = vmatprep.mubr.bf16.mxu0 0
        %1217 = vmatmul.mubr.bf16.gmra.mrb[0].mxu0 %v1179
        %v1218 = vpop.f32.mrb[0].mxu0
        %v1219 = vadd.f32 0.0, %v1218
        %v1220 = vpop.f32.mrb[0].mxu0
        %v1221 = vpop.f32.mrb[0].mxu0
        %v1222 = vpop.f32.mrb[0].mxu0
        %1223 = vdwg.mxu0
        %1224 = vrot.lane.b32.xlu0 %v880, 104
        %v1225 = vpop.permute.xlu0 %1224
        %1226 = vrot.lane.b32.xlu0 %v1000, 104
        %v1227 = vpop.permute.xlu0 %1226
        %v1229 = vsel %vm884, %v1225, 0
        %v1232 = vsel %vm884, %v1227, 0
        %1234 = vmatprep.subr.bf16.mxu0 0
        %1235 = vmatpush1.bf16.xpose.msra.mxu0 %v1232
        %1236 = vmatprep.subr.bf16.mxu0 0
        %1237 = vmatpush1.bf16.xpose.msra.mxu0 0
        %1238 = vmatprep.subr.bf16.mxu0 0
        %1239 = vmatpush1.bf16.xpose.msra.mxu0 0
        %1240 = vmatprep.subr.bf16.mxu0 0
        %1241 = vmatpush1.bf16.xpose.msra.mxu0 0
        %1242 = vmatprep.subr.bf16.mxu0 0
        %1243 = vmatpush1.bf16.xpose.msra.mxu0 0
        %1244 = vmatprep.subr.bf16.mxu0 0
        %1245 = vmatpush1.bf16.xpose.msra.mxu0 0
        %1246 = vmatprep.subr.bf16.mxu0 0
        %1247 = vmatpush1.bf16.xpose.msra.mxu0 0
        %1248 = vmatprep.subr.bf16.mxu0 0
        %1249 = vmatpush1.bf16.xpose.msra.mxu0 0
        %1250 = vmatprep.subr.bf16.mxu0 0
        %1251 = vmatpush1.bf16.xpose.msra.mxu0 0
        %1252 = vmatprep.subr.bf16.mxu0 0
        %1253 = vmatpush1.bf16.xpose.msra.mxu0 0
        %1254 = vmatprep.subr.bf16.mxu0 0
        %1255 = vmatpush1.bf16.xpose.msra.mxu0 0
        %1256 = vmatprep.subr.bf16.mxu0 0
        %1257 = vmatpush1.bf16.xpose.msra.mxu0 0
        %1258 = vmatprep.subr.bf16.mxu0 0
        %1259 = vmatpush1.bf16.xpose.msra.mxu0 0
        %1260 = vmatprep.subr.bf16.mxu0 0
        %1261 = vmatpush1.bf16.xpose.msra.mxu0 0
        %1262 = vmatprep.subr.bf16.mxu0 0
        %1263 = vmatpush1.bf16.xpose.msra.mxu0 0
        %1264 = vmatprep.subr.bf16.mxu0 0
        %1265 = vmatpush1.bf16.xpose.msra.mxu0 0
        %1266 = vmatprep.mubr.bf16.mxu0 0
        %1267 = vmatmul.mubr.bf16.gmra.mrb[0].mxu0 %v1229
        %v1268 = vpop.f32.mrb[0].mxu0
        %v1269 = vadd.f32 0.0, %v1268
        %v1270 = vpop.f32.mrb[0].mxu0
        %v1271 = vpop.f32.mrb[0].mxu0
        %v1272 = vpop.f32.mrb[0].mxu0
        %1273 = vdwg.mxu0
        %v1274 = vsel %vm934, -10000.0, %v1269
        %v1275 = vsel %vm884, %v1274, -inf
        %1276 = vmax.xlane.f32.xlu0 %v1275
        %v1277 = vpop.xlane.xlu0 %1276
        %v1278 = vsub.f32 %v1274, %v1277
        %v1279 = vmul.f32 %v1278, 1.442695
        %v1280 = vpow.pop %v1279
        %v1281 = vsel %vm884, %v1280, 0.0
        %1282 = vadd.xlane.f32.xlu0 %v1281
        %v1283 = vpop.xlane.xlu0 %1282
        %v1284 = vrcp.pop %v1283
        %v1285 = vmul.f32 %v1280, %v1284
        %v1286 = vpack.c.bf16 %v1285, %v1285
        %1287 = vrot.lane.b32.xlu0 %v1064, 104
        %v1288 = vpop.permute.xlu0 %1287
        %v1290 = vsel %vm884, %v1286, 0
        %v1293 = vsel %vm951, %v1288, 0
        %1295 = vmatprep.subr.bf16.mxu0 0
        %1296 = vmatpush1.bf16.msra.mxu0 %v1293
        %1297 = vmatprep.subr.bf16.mxu0 0
        %1298 = vmatpush1.bf16.msra.mxu0 0
        %1299 = vmatprep.subr.bf16.mxu0 0
        %1300 = vmatpush1.bf16.msra.mxu0 0
        %1301 = vmatprep.subr.bf16.mxu0 0
        %1302 = vmatpush1.bf16.msra.mxu0 0
        %1303 = vmatprep.subr.bf16.mxu0 0
        %1304 = vmatpush1.bf16.msra.mxu0 0
        %1305 = vmatprep.subr.bf16.mxu0 0
        %1306 = vmatpush1.bf16.msra.mxu0 0
        %1307 = vmatprep.subr.bf16.mxu0 0
        %1308 = vmatpush1.bf16.msra.mxu0 0
        %1309 = vmatprep.subr.bf16.mxu0 0
        %1310 = vmatpush1.bf16.msra.mxu0 0
        %1311 = vmatprep.subr.bf16.mxu0 0
        %1312 = vmatpush1.bf16.msra.mxu0 0
        %1313 = vmatprep.subr.bf16.mxu0 0
        %1314 = vmatpush1.bf16.msra.mxu0 0
        %1315 = vmatprep.subr.bf16.mxu0 0
        %1316 = vmatpush1.bf16.msra.mxu0 0
        %1317 = vmatprep.subr.bf16.mxu0 0
        %1318 = vmatpush1.bf16.msra.mxu0 0
        %1319 = vmatprep.subr.bf16.mxu0 0
        %1320 = vmatpush1.bf16.msra.mxu0 0
        %1321 = vmatprep.subr.bf16.mxu0 0
        %1322 = vmatpush1.bf16.msra.mxu0 0
        %1323 = vmatprep.subr.bf16.mxu0 0
        %1324 = vmatpush1.bf16.msra.mxu0 0
        %1325 = vmatprep.subr.bf16.mxu0 0
        %1326 = vmatpush1.bf16.msra.mxu0 0
        %1327 = vmatprep.mubr.bf16.mxu0 0
        %1328 = vmatmul.mubr.bf16.gmra.mrb[0].mxu0 %v1290
        %v1329 = vpop.f32.mrb[0].mxu0
        %v1330 = vadd.f32 0.0, %v1329
        %v1331 = vpop.f32.mrb[0].mxu0
        %v1332 = vpop.f32.mrb[0].mxu0
        %v1333 = vpop.f32.mrb[0].mxu0
        %1334 = vdwg.mxu0
        %1336 = vrot.lane.b32.xlu0 %v1108, 8
        %v1337 = vpop.permute.xlu0 %1336
        %1340 = vrot.lane.b32.xlu0 %v1219, 16
        %v1341 = vpop.permute.xlu0 %1340
        %1344 = vrot.lane.b32.xlu0 %v1330, 24
        %v1345 = vpop.permute.xlu0 %1344
        %v1347 = vsel %vm884, %v990, %v1337
        %vm1348 = vcmask 130048
        %v1349 = vsel %vm1348, %v1347, %v1341
        %vm1350 = vcmask 195584
        %v1351 = vsel %vm1350, %v1349, %v1345
        %v1352 = vpack.c.bf16 %v1351, %v1351
        %v1353 = vld [vmem:[#allocation16] sm:$0xf]
        %v1354 = vld [vmem:[#allocation16 + $0x4] sm:$0xf]
        %v1355 = vld [vmem:[#allocation16 + $0x8] sm:$0xf]
        %v1356 = vld [vmem:[#allocation16 + $0xc] sm:$0xf]
        %v1357 = vld [vmem:[#allocation22] sm:$0x1]
        %v1359 = vlaneseq
        %v1360 = vshrl.u32 %v1359, 7
        %v1361 = vsub.s32 0, %v1360
        %v1362 = vrot.slane %v1357, %v1361
        %v1368 = vunpack.c.l.b16 %v1353
        %v1369 = vunpack.c.l.b16 %v1354
        %v1370 = vunpack.c.l.b16 %v1355
        %v1371 = vunpack.c.l.b16 %v1356
        %v1372 = vpack.c.b16 %v1369, %v1368
        %v1373 = vpack.c.b16 %v1371, %v1370
        %v1377 = vsel %vm836, %v1352, 0
        %1379 = vmatprep.subr.bf16.mxu0 0
        %1380 = vmatpush1.bf16.msra.mxu0 %v1372
        %1381 = vmatprep.subr.bf16.mxu0 0
        %1382 = vmatpush1.bf16.msra.mxu0 %v1373
        %1383 = vmatprep.subr.bf16.mxu0 0
        %1384 = vmatpush1.bf16.msra.mxu0 0
        %1385 = vmatprep.subr.bf16.mxu0 0
        %1386 = vmatpush1.bf16.msra.mxu0 0
        %1387 = vmatprep.subr.bf16.mxu0 0
        %1388 = vmatpush1.bf16.msra.mxu0 0
        %1389 = vmatprep.subr.bf16.mxu0 0
        %1390 = vmatpush1.bf16.msra.mxu0 0
        %1391 = vmatprep.subr.bf16.mxu0 0
        %1392 = vmatpush1.bf16.msra.mxu0 0
        %1393 = vmatprep.subr.bf16.mxu0 0
        %1394 = vmatpush1.bf16.msra.mxu0 0
        %1395 = vmatprep.subr.bf16.mxu0 0
        %1396 = vmatpush1.bf16.msra.mxu0 0
        %1397 = vmatprep.subr.bf16.mxu0 0
        %1398 = vmatpush1.bf16.msra.mxu0 0
        %1399 = vmatprep.subr.bf16.mxu0 0
        %1400 = vmatpush1.bf16.msra.mxu0 0
        %1401 = vmatprep.subr.bf16.mxu0 0
        %1402 = vmatpush1.bf16.msra.mxu0 0
        %1403 = vmatprep.subr.bf16.mxu0 0
        %1404 = vmatpush1.bf16.msra.mxu0 0
        %1405 = vmatprep.subr.bf16.mxu0 0
        %1406 = vmatpush1.bf16.msra.mxu0 0
        %1407 = vmatprep.subr.bf16.mxu0 0
        %1408 = vmatpush1.bf16.msra.mxu0 0
        %1409 = vmatprep.subr.bf16.mxu0 0
        %1410 = vmatpush1.bf16.msra.mxu0 0
        %1411 = vmatprep.mubr.bf16.mxu0 0
        %1412 = vmatmul.mubr.bf16.gmra.mrb[0].mxu0 %v1377
        %v1413 = vpop.f32.mrb[0].mxu0
        %v1414 = vadd.f32 %v1362, %v1413
        %v1415 = vpop.f32.mrb[0].mxu0
        %v1416 = vpop.f32.mrb[0].mxu0
        %v1417 = vpop.f32.mrb[0].mxu0
        %1418 = vdwg.mxu0
        %1419 = vst.msk [vmem:[%s664] sm:$0xff] %vm836, %v1414
        %s1420 = sand.u32 %s337, 1
        %s1421 = scalar_lea.sflag [#allocation6], %s1420
        %s1422 = sand.u32 %s337, 1
        %s1423 = smul.addr %s1422, 8
        %s1424 = scalar_lea.vmem [#allocation24], %s1423
        // Predicated region
        $region121: #{tpu_custom_call.1} parent=67 // pred_check
          %p1425 = pneg %p347
        $region122: #{tpu_custom_call.1} parent=67 // pred_check_branch
          %1427 = sbr.rel (%p1425) target = $region124
        $region123: #{tpu_custom_call.1} parent=67 // pred_region
          %s1429 = ssub.s32 128, 128
          %1430 = vsyncadd %s1421, %s1429
          %s1431 = sadd.s32 %s44, %s43
          %s1432 = smul.addr %s1431, 128
          %s1433 = scalar_lea.hbm %s12, %s1432
          %s1435 = sshll.u32 %s1424, 4
          %s1436 = int_to_ptr.vmem [resolvable:$true] %s1435
          %1438 = dma.vmem_to_hbm [thread:$0]  %s1436, 128, %s1433, %s1421
        $region124: #{tpu_custom_call.1} parent=67 // pred_fallthru
          _
      $region68: #{tpu_custom_call.1} parent=5 // pred_fallthru
        _
      %p1439 = scmp.le.s32.totalorder 2, %s34
      // Predicated region
      $region125: #{tpu_custom_call.1} parent=5 // pred_check
        %p1440 = pneg %p1439
      $region126: #{tpu_custom_call.1} parent=5 // pred_check_branch
        %1442 = sbr.rel (%p1440) target = $region128
      $region127: #{tpu_custom_call.1} parent=5 // pred_region
        %s1443 = ssub.s32 %s34, 2
        // Predicated region
        $region129: #{tpu_custom_call.1} parent=127 // pred_check
          %p1444 = pneg %p353
        $region130: #{tpu_custom_call.1} parent=127 // pred_check_branch
          %1446 = sbr.rel (%p1444) target = $region132
        $region131: #{tpu_custom_call.1} parent=127 // pred_region
          %s1447 = sand.u32 %s338, 1
          %s1448 = scalar_lea.sflag [#allocation6], %s1447
          %s1449 = sand.u32 %s338, 1
          %s1450 = smul.addr %s1449, 8
          %s1451 = scalar_lea.vmem [#allocation24], %s1450
          %1452 = dma.done %s1448, 128
        $region132: #{tpu_custom_call.1} parent=127 // pred_fallthru
          _
      $region128: #{tpu_custom_call.1} parent=5 // pred_fallthru
        _
    $region6: #{tpu_custom_call.1} parent=1 // loop_footer
      %s38 = sadd.s32 1, %s34
    $region7: #{tpu_custom_call.1} parent=1 // loop_footer_branch
      %33 = sbr.rel target = $region3
    $region8: #{tpu_custom_call.1} parent=1 // loop_exit
      _
    %1453 = vsyncpa [#allocation5], 1
    %s1454 = scalar_lea.sflag [#allocation5], 1
    %1455 = vsyncpa %s1454, 1
    %1456 = vsyncpa [#allocation8], 1
    %s1457 = scalar_lea.sflag [#allocation8], 1
    %1458 = vsyncpa %s1457, 1
    %1459 = vsyncpa [#allocation11], 1
    %s1460 = scalar_lea.sflag [#allocation11], 1
    %1461 = vsyncpa %s1460, 1
    %1462 = vsyncpa [#allocation14], 1
    %1463 = vsyncpa [#allocation17], 1
    %1464 = vsyncpa [#allocation20], 1
    %1465 = vsyncpa [#allocation23], 1
    %1466 = vsyncpa [#allocation6], 1
    %s1467 = scalar_lea.sflag [#allocation6], 1
    %1468 = vsyncpa %s1467, 1

</llo_original>
